<compile_context>
chip_gen: v6e
topology: v6e:2x2x1
jax: 0.10.0
libtpu: 0.0.40
codegen_flags: <defaults>
</compile_context>

<pallas_src>
import jax
import jax.numpy as jnp
import numpy as np
from jax.experimental import pallas as pl
from jax.experimental.pallas import tpu as pltpu


def _abcnn2_kernel(wvec_ref, bias_ref, f0_ref, f1_ref, m0_ref, m1_ref,
                   out0_ref, out1_ref, xp_ref):
    width = wvec_ref.shape[0]                 # static
    TB, L, D = f0_ref.shape
    Lc = L + width - 1                        # conv output length
    P = width - 1                             # conv padding per side

    # Mask the two sentence streams.
    x0 = f0_ref[...] * m0_ref[...]            # [TB, L, D]
    x1 = f1_ref[...] * m1_ref[...]            # [TB, L, D]

    # Stage both streams into one zero-padded scratch [2*TB, L+2P, D] so the
    # "full" conv (output length Lc) becomes `width` shifted reads.
    if P > 0:
        zpad = jnp.zeros((2 * TB, P, D), dtype=xp_ref.dtype)
        xp_ref[:, :P, :] = zpad
        xp_ref[:, P + L:, :] = zpad
    xp_ref[:TB, P:P + L, :] = x0
    xp_ref[TB:, P:P + L, :] = x1

    # Conv2d(kernel=(w,1), padding=(w-1,0)) + bias, then tanh.
    # (cross-correlation: out[i] = bias + sum_k W[k] * xpad[i + k])
    bias = bias_ref[0]
    conv = wvec_ref[0] * xp_ref[:, 0:Lc, :]
    for k in range(1, width):
        conv = conv + wvec_ref[k] * xp_ref[:, k:k + Lc, :]
    c = jnp.tanh(conv + bias)                 # [2*TB, Lc, D]
    c0 = c[:TB]                               # [TB, Lc, D]
    c1 = c[TB:]                               # [TB, Lc, D]

    # Match score A[i,j] = 1 / (1 + ||c0_i - c1_j||_2) via the Gram identity;
    # the -2*c0@c1^T term is a single batched MXU matmul.
    n0 = jnp.sum(c0 * c0, axis=-1, keepdims=True)            # [TB, Lc, 1]
    n1 = jnp.sum(c1 * c1, axis=-1)[:, None, :]               # [TB, 1, Lc]
    g = jnp.einsum("bqd,bkd->bqk", c0, c1,
                   preferred_element_type=jnp.float32,
                   precision=jax.lax.Precision.HIGHEST)      # [TB, Lc, Lc]
    d2 = jnp.maximum(n0 + n1 - 2.0 * g, 0.0)  # clamp: fp cancellation near 0
    dist = jnp.sqrt(d2)
    # NOTE: pl.reciprocal(1.0 + dist, approx=True) would push this onto the EUP
    # slot; kept exact so the reference check below stays tight.
    A = 1.0 / (1.0 + dist)                                    # [TB, Lc, Lc]

    a0 = jnp.sum(A, axis=2, keepdims=True)                    # [TB, Lc, 1] rows
    a1 = jnp.sum(A, axis=1)[..., None]                        # [TB, Lc, 1] cols
    w0 = c0 * a0                                              # [TB, Lc, D]
    w1 = c1 * a1                                              # [TB, Lc, D]

    # AvgPool2d(kernel=(w,1), stride=1, padding=0): width shifted adds.
    p0 = w0[:, 0:L, :]
    p1 = w1[:, 0:L, :]
    for k in range(1, width):
        p0 = p0 + w0[:, k:k + L, :]
        p1 = p1 + w1[:, k:k + L, :]
    inv_w = 1.0 / float(width)
    out0_ref[...] = (p0 * inv_w).astype(out0_ref.dtype)
    out1_ref[...] = (p1 * inv_w).astype(out1_ref.dtype)


def _pick_batch_tile(B, L, D, width, budget_bytes=4 * 1024 * 1024):
    """Largest divisor of B whose per-step working set stays well inside the
    scoped-VMEM default (and v7x's 64 MiB physical VMEM)."""
    Lc = L + width - 1
    Lp = L + 2 * (width - 1)
    per_sample = 4 * (
        2 * 2 * (2 * L * D + 2 * L)      # f0,f1,m0,m1 inputs, double-buffered
        + 2 * 2 * (L * D)                # out0,out1 outputs, double-buffered
        + 2 * Lp * D                     # padded-conv scratch
        + 2 * Lc * D + 3 * Lc * Lc)      # c / Gram / A live intermediates
    tb = 1
    for d in range(1, B + 1):
        if B % d == 0 and d * per_sample <= budget_bytes:
            tb = d
    return tb


def abcnn2_forward(f0, f1, mask0, mask1, conv_w, conv_b, width):
    """f0, f1: [B, L, D]; mask0, mask1: [B, L]; conv_w: [1,1,width,1]; conv_b: [1]."""
    B, L, D = f0.shape
    wvec = conv_w.reshape(width).astype(jnp.float32)          # SMEM scalars
    bias = conv_b.reshape(1).astype(jnp.float32)              # SMEM scalar
    m0 = mask0[..., None].astype(jnp.float32)                 # [B, L, 1]
    m1 = mask1[..., None].astype(jnp.float32)
    TB = _pick_batch_tile(B, L, D, width)

    grid_spec = pltpu.PrefetchScalarGridSpec(
        num_scalar_prefetch=0,
        grid=(B // TB,),
        in_specs=[
            pl.BlockSpec(memory_space=pltpu.MemorySpace.SMEM),    # conv weights
            pl.BlockSpec(memory_space=pltpu.MemorySpace.SMEM),    # conv bias
            pl.BlockSpec((TB, L, D), lambda b: (b, 0, 0)),        # f0
            pl.BlockSpec((TB, L, D), lambda b: (b, 0, 0)),        # f1
            pl.BlockSpec((TB, L, 1), lambda b: (b, 0, 0)),        # mask0
            pl.BlockSpec((TB, L, 1), lambda b: (b, 0, 0)),        # mask1
        ],
        out_specs=[
            pl.BlockSpec((TB, L, D), lambda b: (b, 0, 0)),
            pl.BlockSpec((TB, L, D), lambda b: (b, 0, 0)),
        ],
        scratch_shapes=[
            pltpu.VMEM((2 * TB, L + 2 * (width - 1), D), jnp.float32),
        ],
    )

    return pl.pallas_call(
        _abcnn2_kernel,
        out_shape=(jax.ShapeDtypeStruct((B, L, D), jnp.float32),
                   jax.ShapeDtypeStruct((B, L, D), jnp.float32)),
        grid_spec=grid_spec,
        compiler_params=pltpu.CompilerParams(
            dimension_semantics=("parallel",)),
    )(wvec, bias, f0.astype(jnp.float32), f1.astype(jnp.float32), m0, m1)


def abcnn2_reference(f0, f1, mask0, mask1, conv_w, conv_b, width):
    """Pure-JAX replica of the PyTorch forward (for verification)."""
    B, L, D = f0.shape
    Lc = L + width - 1
    wvec = conv_w.reshape(width)
    x0 = f0 * mask0[..., None]
    x1 = f1 * mask1[..., None]

    def conv1(x):
        xp = jnp.pad(x, ((0, 0), (width - 1, width - 1), (0, 0)))
        out = sum(wvec[kk] * xp[:, kk:kk + Lc, :] for kk in range(width))
        return out + conv_b.reshape(())

    c0 = jnp.tanh(conv1(x0))
    c1 = jnp.tanh(conv1(x1))

    diff = c0[:, :, None, :] - c1[:, None, :, :]
    A = 1.0 / (1.0 + jnp.sqrt(jnp.sum(diff * diff, axis=-1)))
    a0 = jnp.sum(A, axis=-1)[..., None]
    a1 = jnp.sum(A, axis=1)[..., None]
    w0 = c0 * a0
    w1 = c1 * a1

    def pool(x):
        return sum(x[:, kk:kk + L, :] for kk in range(width)) / width

    return pool(w0), pool(w1)


if __name__ == "__main__":
    key = jax.random.PRNGKey(0)
    B, L, D, W = 2, 8, 32, 3        # batch, seq_len, vec_dim, width
    k0, k1, k2, k3, k4 = jax.random.split(key, 5)

    f0 = jax.random.normal(k0, (B, L, D), jnp.float32)
    f1 = jax.random.normal(k1, (B, L, D), jnp.float32)
    mask0 = (jax.random.uniform(k2, (B, L)) > 0.2).astype(jnp.float32)
    mask1 = (jax.random.uniform(k3, (B, L)) > 0.2).astype(jnp.float32)

    # Deterministic "Conv2d(1, 1, (W, 1))" parameters.
    conv_w = jax.random.normal(k4, (1, 1, W, 1), jnp.float32) * 0.5
    conv_b = jnp.array([0.1], jnp.float32)

    out0, out1 = abcnn2_forward(f0, f1, mask0, mask1, conv_w, conv_b, W)
    jax.block_until_ready((out0, out1))

    r0, r1 = abcnn2_reference(f0, f1, mask0, mask1, conv_w, conv_b, W)
    # Tolerance is 1e-3: the Gram-matrix distance (a) is algebraically exact but
    # suffers sqrt-cancellation vs. the explicit-diff reference when two conv
    # rows are (near-)identical, e.g. fully-masked boundary positions.
    np.testing.assert_allclose(np.asarray(out0), np.asarray(r0), rtol=1e-3, atol=1e-3)
    np.testing.assert_allclose(np.asarray(out1), np.asarray(r1), rtol=1e-3, atol=1e-3)

    print("KERNEL_OK")
</pallas_src>

<mosaic_0001>
module attributes {stable_mosaic.version = 11 : i64} {
  func.func @_abcnn2_kernel(%arg0: i32, %arg1: memref<3xf32, #tpu.memory_space<smem>>, %arg2: memref<1xf32, #tpu.memory_space<smem>>, %arg3: memref<2x8x32xf32, #tpu.memory_space<vmem>>, %arg4: memref<2x8x32xf32, #tpu.memory_space<vmem>>, %arg5: memref<2x8x1xf32, #tpu.memory_space<vmem>>, %arg6: memref<2x8x1xf32, #tpu.memory_space<vmem>>, %arg7: memref<2x8x32xf32, #tpu.memory_space<vmem>>, %arg8: memref<2x8x32xf32, #tpu.memory_space<vmem>>, %arg9: memref<4x12x32xf32, #tpu.memory_space<vmem>>) attributes {dimension_semantics = [#tpu.dimension_semantics<parallel>], iteration_bounds = array<i64: 1>, scalar_prefetch = 0 : i64, scratch_operands = 1 : i64, tpu.core_type = #tpu.core_type<tc>, window_params = [{transform_indices = @transform_0, window_bounds = array<i64: 3>}, {transform_indices = @transform_1, window_bounds = array<i64: 1>}, {transform_indices = @transform_2, window_bounds = array<i64: 2, 8, 32>}, {transform_indices = @transform_3, window_bounds = array<i64: 2, 8, 32>}, {transform_indices = @transform_4, window_bounds = array<i64: 2, 8, 1>}, {transform_indices = @transform_5, window_bounds = array<i64: 2, 8, 1>}, {transform_indices = @transform_6, window_bounds = array<i64: 2, 8, 32>}, {transform_indices = @transform_7, window_bounds = array<i64: 2, 8, 32>}]} {
    %c0 = arith.constant 0 : index
    %c0_0 = arith.constant 0 : index
    %c0_1 = arith.constant 0 : index
    %0 = vector.load %arg3[%c0, %c0_0, %c0_1] : memref<2x8x32xf32, #tpu.memory_space<vmem>>, vector<2x8x32xf32>
    %c0_2 = arith.constant 0 : index
    %c0_3 = arith.constant 0 : index
    %c0_4 = arith.constant 0 : index
    %1 = vector.load %arg5[%c0_2, %c0_3, %c0_4] : memref<2x8x1xf32, #tpu.memory_space<vmem>>, vector<2x8x1xf32>
    %2 = vector.broadcast %1 : vector<2x8x1xf32> to vector<2x8x32xf32>
    %3 = arith.mulf %0, %2 : vector<2x8x32xf32>
    %c0_5 = arith.constant 0 : index
    %c0_6 = arith.constant 0 : index
    %c0_7 = arith.constant 0 : index
    %4 = vector.load %arg4[%c0_5, %c0_6, %c0_7] : memref<2x8x32xf32, #tpu.memory_space<vmem>>, vector<2x8x32xf32>
    %c0_8 = arith.constant 0 : index
    %c0_9 = arith.constant 0 : index
    %c0_10 = arith.constant 0 : index
    %5 = vector.load %arg6[%c0_8, %c0_9, %c0_10] : memref<2x8x1xf32, #tpu.memory_space<vmem>>, vector<2x8x1xf32>
    %6 = vector.broadcast %5 : vector<2x8x1xf32> to vector<2x8x32xf32>
    %7 = arith.mulf %4, %6 : vector<2x8x32xf32>
    %cst = arith.constant 0.000000e+00 : f32
    %8 = vector.broadcast %cst : f32 to vector<4x2x32xf32>
    %c0_11 = arith.constant 0 : index
    %c0_12 = arith.constant 0 : index
    %c0_13 = arith.constant 0 : index
    %9 = vector.load %arg9[%c0_11, %c0_12, %c0_13] : memref<4x12x32xf32, #tpu.memory_space<vmem>>, vector<4x2x32xf32>
    tpu.vector_store %arg9[%c0_11, %c0_12, %c0_13], %8 {strides = array<i32>} : memref<4x12x32xf32, #tpu.memory_space<vmem>>, vector<4x2x32xf32>,
    %c0_14 = arith.constant 0 : index
    %c10 = arith.constant 10 : index
    %c0_15 = arith.constant 0 : index
    %10 = vector.load %arg9[%c0_14, %c10, %c0_15] : memref<4x12x32xf32, #tpu.memory_space<vmem>>, vector<4x2x32xf32>
    tpu.vector_store %arg9[%c0_14, %c10, %c0_15], %8 {strides = array<i32>} : memref<4x12x32xf32, #tpu.memory_space<vmem>>, vector<4x2x32xf32>,
    %c0_16 = arith.constant 0 : index
    %c2 = arith.constant 2 : index
    %c0_17 = arith.constant 0 : index
    %11 = vector.load %arg9[%c0_16, %c2, %c0_17] : memref<4x12x32xf32, #tpu.memory_space<vmem>>, vector<2x8x32xf32>
    tpu.vector_store %arg9[%c0_16, %c2, %c0_17], %3 {strides = array<i32>} : memref<4x12x32xf32, #tpu.memory_space<vmem>>, vector<2x8x32xf32>,
    %c2_18 = arith.constant 2 : index
    %c2_19 = arith.constant 2 : index
    %c0_20 = arith.constant 0 : index
    %12 = vector.load %arg9[%c2_18, %c2_19, %c0_20] : memref<4x12x32xf32, #tpu.memory_space<vmem>>, vector<2x8x32xf32>
    tpu.vector_store %arg9[%c2_18, %c2_19, %c0_20], %7 {strides = array<i32>} : memref<4x12x32xf32, #tpu.memory_space<vmem>>, vector<2x8x32xf32>,
    %c0_21 = arith.constant 0 : index
    %13 = memref.load %arg2[%c0_21] : memref<1xf32, #tpu.memory_space<smem>>
    %c0_22 = arith.constant 0 : index
    %14 = memref.load %arg1[%c0_22] : memref<3xf32, #tpu.memory_space<smem>>
    %c0_23 = arith.constant 0 : index
    %c0_24 = arith.constant 0 : index
    %c0_25 = arith.constant 0 : index
    %15 = vector.load %arg9[%c0_23, %c0_24, %c0_25] : memref<4x12x32xf32, #tpu.memory_space<vmem>>, vector<4x10x32xf32>
    %16 = vector.broadcast %14 : f32 to vector<4x10x32xf32>
    %17 = arith.mulf %16, %15 : vector<4x10x32xf32>
    %c1 = arith.constant 1 : index
    %18 = memref.load %arg1[%c1] : memref<3xf32, #tpu.memory_space<smem>>
    %c0_26 = arith.constant 0 : index
    %c1_27 = arith.constant 1 : index
    %c0_28 = arith.constant 0 : index
    %19 = vector.load %arg9[%c0_26, %c1_27, %c0_28] : memref<4x12x32xf32, #tpu.memory_space<vmem>>, vector<4x10x32xf32>
    %20 = vector.broadcast %18 : f32 to vector<4x10x32xf32>
    %21 = arith.mulf %20, %19 : vector<4x10x32xf32>
    %22 = arith.addf %17, %21 : vector<4x10x32xf32>
    %c2_29 = arith.constant 2 : index
    %23 = memref.load %arg1[%c2_29] : memref<3xf32, #tpu.memory_space<smem>>
    %c0_30 = arith.constant 0 : index
    %c2_31 = arith.constant 2 : index
    %c0_32 = arith.constant 0 : index
    %24 = vector.load %arg9[%c0_30, %c2_31, %c0_32] : memref<4x12x32xf32, #tpu.memory_space<vmem>>, vector<4x10x32xf32>
    %25 = vector.broadcast %23 : f32 to vector<4x10x32xf32>
    %26 = arith.mulf %25, %24 : vector<4x10x32xf32>
    %27 = arith.addf %22, %26 : vector<4x10x32xf32>
    %28 = vector.broadcast %13 : f32 to vector<4x10x32xf32>
    %29 = arith.addf %27, %28 : vector<4x10x32xf32>
    %30 = math.tanh %29 : vector<4x10x32xf32>
    %31 = vector.extract_strided_slice %30 {offsets = [0, 0, 0], sizes = [2, 10, 32], strides = [1, 1, 1]} : vector<4x10x32xf32> to vector<2x10x32xf32>
    %32 = vector.extract_strided_slice %30 {offsets = [2, 0, 0], sizes = [2, 10, 32], strides = [1, 1, 1]} : vector<4x10x32xf32> to vector<2x10x32xf32>
    %33 = arith.mulf %31, %31 : vector<2x10x32xf32>
    %cst_33 = arith.constant dense<0.000000e+00> : vector<2x10xf32>
    %34 = vector.multi_reduction <add>, %33, %cst_33 [2] : vector<2x10x32xf32> to vector<2x10xf32>
    %35 = vector.shape_cast %34 : vector<2x10xf32> to vector<2x10x1xf32>
    %36 = arith.mulf %32, %32 : vector<2x10x32xf32>
    %cst_34 = arith.constant dense<0.000000e+00> : vector<2x10xf32>
    %37 = vector.multi_reduction <add>, %36, %cst_34 [2] : vector<2x10x32xf32> to vector<2x10xf32>
    %38 = vector.shape_cast %37 : vector<2x10xf32> to vector<2x1x10xf32>
    "tpu.trace_start"() <{level = 10 : i32, message = "bqd,bkd->bqk"}> : () -> ()
    %cst_35 = arith.constant dense<0.000000e+00> : vector<2x10x10xf32>
    %39 = tpu.matmul %31, %32, %cst_35 {dimension_numbers = #tpu.dot_dimension_numbers<[2], [2], [1], [1], [0, 0, 0, 1, 1, 1], [0], [0]>, precision = #tpu.contract_precision<fp32>} : vector<2x10x32xf32>, vector<2x10x32xf32>, vector<2x10x10xf32> -> vector<2x10x10xf32>
    "tpu.trace_stop"() : () -> ()
    %40 = vector.broadcast %35 : vector<2x10x1xf32> to vector<2x10x10xf32>
    %41 = vector.broadcast %38 : vector<2x1x10xf32> to vector<2x10x10xf32>
    %42 = arith.addf %40, %41 : vector<2x10x10xf32>
    %cst_36 = arith.constant 2.000000e+00 : f32
    %43 = vector.broadcast %cst_36 : f32 to vector<2x10x10xf32>
    %44 = arith.mulf %43, %39 : vector<2x10x10xf32>
    %45 = arith.subf %42, %44 : vector<2x10x10xf32>
    %cst_37 = arith.constant 0.000000e+00 : f32
    %46 = vector.broadcast %cst_37 : f32 to vector<2x10x10xf32>
    %47 = arith.maximumf %45, %46 : vector<2x10x10xf32>
    %48 = math.sqrt %47 : vector<2x10x10xf32>
    %cst_38 = arith.constant 1.000000e+00 : f32
    %49 = vector.broadcast %cst_38 : f32 to vector<2x10x10xf32>
    %50 = arith.addf %49, %48 : vector<2x10x10xf32>
    %cst_39 = arith.constant 1.000000e+00 : f32
    %51 = vector.broadcast %cst_39 : f32 to vector<2x10x10xf32>
    %52 = arith.divf %51, %50 : vector<2x10x10xf32>
    %cst_40 = arith.constant dense<0.000000e+00> : vector<2x10xf32>
    %53 = vector.multi_reduction <add>, %52, %cst_40 [2] : vector<2x10x10xf32> to vector<2x10xf32>
    %54 = vector.shape_cast %53 : vector<2x10xf32> to vector<2x10x1xf32>
    %cst_41 = arith.constant dense<0.000000e+00> : vector<2x10xf32>
    %55 = vector.multi_reduction <add>, %52, %cst_41 [1] : vector<2x10x10xf32> to vector<2x10xf32>
    %56 = vector.shape_cast %55 : vector<2x10xf32> to vector<2x10x1xf32>
    %57 = vector.broadcast %54 : vector<2x10x1xf32> to vector<2x10x32xf32>
    %58 = arith.mulf %31, %57 : vector<2x10x32xf32>
    %59 = vector.broadcast %56 : vector<2x10x1xf32> to vector<2x10x32xf32>
    %60 = arith.mulf %32, %59 : vector<2x10x32xf32>
    %61 = vector.extract_strided_slice %58 {offsets = [0, 0, 0], sizes = [2, 8, 32], strides = [1, 1, 1]} : vector<2x10x32xf32> to vector<2x8x32xf32>
    %62 = vector.extract_strided_slice %60 {offsets = [0, 0, 0], sizes = [2, 8, 32], strides = [1, 1, 1]} : vector<2x10x32xf32> to vector<2x8x32xf32>
    %63 = vector.extract_strided_slice %58 {offsets = [0, 1, 0], sizes = [2, 8, 32], strides = [1, 1, 1]} : vector<2x10x32xf32> to vector<2x8x32xf32>
    %64 = arith.addf %61, %63 : vector<2x8x32xf32>
    %65 = vector.extract_strided_slice %60 {offsets = [0, 1, 0], sizes = [2, 8, 32], strides = [1, 1, 1]} : vector<2x10x32xf32> to vector<2x8x32xf32>
    %66 = arith.addf %62, %65 : vector<2x8x32xf32>
    %67 = vector.extract_strided_slice %58 {offsets = [0, 2, 0], sizes = [2, 8, 32], strides = [1, 1, 1]} : vector<2x10x32xf32> to vector<2x8x32xf32>
    %68 = arith.addf %64, %67 : vector<2x8x32xf32>
    %69 = vector.extract_strided_slice %60 {offsets = [0, 2, 0], sizes = [2, 8, 32], strides = [1, 1, 1]} : vector<2x10x32xf32> to vector<2x8x32xf32>
    %70 = arith.addf %66, %69 : vector<2x8x32xf32>
    %cst_42 = arith.constant 0.333333343 : f32
    %71 = vector.broadcast %cst_42 : f32 to vector<2x8x32xf32>
    %72 = arith.mulf %68, %71 : vector<2x8x32xf32>
    %c0_43 = arith.constant 0 : index
    %c0_44 = arith.constant 0 : index
    %c0_45 = arith.constant 0 : index
    %73 = vector.load %arg7[%c0_43, %c0_44, %c0_45] : memref<2x8x32xf32, #tpu.memory_space<vmem>>, vector<2x8x32xf32>
    tpu.vector_store %arg7[%c0_43, %c0_44, %c0_45], %72 {strides = array<i32>} : memref<2x8x32xf32, #tpu.memory_space<vmem>>, vector<2x8x32xf32>,
    %cst_46 = arith.constant 0.333333343 : f32
    %74 = vector.broadcast %cst_46 : f32 to vector<2x8x32xf32>
    %75 = arith.mulf %70, %74 : vector<2x8x32xf32>
    %c0_47 = arith.constant 0 : index
    %c0_48 = arith.constant 0 : index
    %c0_49 = arith.constant 0 : index
    %76 = vector.load %arg8[%c0_47, %c0_48, %c0_49] : memref<2x8x32xf32, #tpu.memory_space<vmem>>, vector<2x8x32xf32>
    tpu.vector_store %arg8[%c0_47, %c0_48, %c0_49], %75 {strides = array<i32>} : memref<2x8x32xf32, #tpu.memory_space<vmem>>, vector<2x8x32xf32>,
    return
  }
  func.func @transform_0(%arg0: i32) -> i32 {
    %c0_i32 = arith.constant 0 : i32
    %c0_i32_0 = arith.constant 0 : i32
    return %c0_i32 : i32
  }
  func.func @transform_1(%arg0: i32) -> i32 {
    %c0_i32 = arith.constant 0 : i32
    %c0_i32_0 = arith.constant 0 : i32
    return %c0_i32 : i32
  }
  func.func @transform_2(%arg0: i32) -> (i32, i32, i32) {
    %c0_i32 = arith.constant 0 : i32
    %c0_i32_0 = arith.constant 0 : i32
    %c0_i32_1 = arith.constant 0 : i32
    return %arg0, %c0_i32, %c0_i32_0 : i32, i32, i32
  }
  func.func @transform_3(%arg0: i32) -> (i32, i32, i32) {
    %c0_i32 = arith.constant 0 : i32
    %c0_i32_0 = arith.constant 0 : i32
    %c0_i32_1 = arith.constant 0 : i32
    return %arg0, %c0_i32, %c0_i32_0 : i32, i32, i32
  }
  func.func @transform_4(%arg0: i32) -> (i32, i32, i32) {
    %c0_i32 = arith.constant 0 : i32
    %c0_i32_0 = arith.constant 0 : i32
    %c0_i32_1 = arith.constant 0 : i32
    return %arg0, %c0_i32, %c0_i32_0 : i32, i32, i32
  }
  func.func @transform_5(%arg0: i32) -> (i32, i32, i32) {
    %c0_i32 = arith.constant 0 : i32
    %c0_i32_0 = arith.constant 0 : i32
    %c0_i32_1 = arith.constant 0 : i32
    return %arg0, %c0_i32, %c0_i32_0 : i32, i32, i32
  }
  func.func @transform_6(%arg0: i32) -> (i32, i32, i32) {
    %c0_i32 = arith.constant 0 : i32
    %c0_i32_0 = arith.constant 0 : i32
    %c0_i32_1 = arith.constant 0 : i32
    return %arg0, %c0_i32, %c0_i32_0 : i32, i32, i32
  }
  func.func @transform_7(%arg0: i32) -> (i32, i32, i32) {
    %c0_i32 = arith.constant 0 : i32
    %c0_i32_0 = arith.constant 0 : i32
    %c0_i32_1 = arith.constant 0 : i32
    return %arg0, %c0_i32, %c0_i32_0 : i32, i32, i32
  }
}

</mosaic_0001>

<llo_original>
// kernel: tpu_custom_call.1
$region0: #{tpu_custom_call.1}
  #allocation0 [shape = 'u32[]', space=smem, size = 0x4, offset = 0x4, fixed_abs, tag = 'smem constant byte address 0x4 - core index']
  #allocation1 [shape = 'u32[144,128]{1,0:T(1,128)}', space=vmem, size = 0x12000, scoped, tag = 'internal scratch']
  #allocation2 [shape = 'f32[4,12,32]{2,1,0:T(8,128)}', space=vmem, size = 0x8000, scoped, tag = 'scratch operand']
  #allocation3 [shape = 'f32[1]{0:T(128)S(6)}', space=smem, size = 0x200, scoped, tag = 'scoped memory for tpu_custom_call.1']
  %s0 = inlined_call_operand.vmem [shape: f32[3], index: 0, kind: input, shape index: {}]
  %s1 = inlined_call_operand.<no memory space> [shape: f32[1], index: 1, kind: input, shape index: {}]
  %s2 = inlined_call_operand.vmem [shape: f32[2,8,32], index: 2, kind: input, shape index: {}]
  %s3 = inlined_call_operand.vmem [shape: f32[2,8,32], index: 3, kind: input, shape index: {}]
  %s4 = inlined_call_operand.vmem [shape: f32[2,8,1], index: 4, kind: input, shape index: {}]
  %s5 = inlined_call_operand.vmem [shape: f32[2,8,1], index: 5, kind: input, shape index: {}]
  %s6 = inlined_call_operand.hbm [shape: f32[2,8,32], index: 6, kind: output, shape index: {0}]
  %s7 = inlined_call_operand.hbm [shape: f32[2,8,32], index: 7, kind: output, shape index: {1}]
  %8 = xla_tuple %s6, %s7
  %s9 = sld [smem:[#allocation0]]
  $region46: #{tpu_custom_call.1} parent=0
    _
  %s11 = ssub.s32 1, %s9
  %s12 = scalar_select 0, %s11, %s9
  %13 = sst [smem:[#allocation3]] %s1
  $region1: #{tpu_custom_call.1} parent=0
    #allocation4 [shape = 'u8[512]{0}', space=smem, size = 0x200, scoped, tag = 'input window, operand 0, single buffered']
    #allocation5 [shape = 's32[1]{0}', space=sflag, size = 0x4, scoped, tag = 'scoped memory for tpu_custom_call.1']
    #allocation6 [shape = 's32[1]{0}', space=sflag, size = 0x4, scoped, tag = 'scoped memory for tpu_custom_call.1']
    #allocation7 [shape = 'u8[8192]{0}', space=vmem, size = 0x2000, scoped, tag = 'output window, operand 0, single buffered']
    #allocation8 [shape = 'u8[8192]{0}', space=vmem, size = 0x2000, scoped, tag = 'output window, operand 1, single buffered']
    #allocation9 [shape = 's32[1]{0}', space=sflag, size = 0x4, scoped, tag = 'scoped memory for tpu_custom_call.1']
    %14 = vsyncpa [#allocation6], 0
    %15 = vsyncpa [#allocation5], 0
    %16 = vsyncpa [#allocation9], 0
    // Predicated region
    $region2: #{tpu_custom_call.1} parent=1 // pred_check
      _
    $region3: #{tpu_custom_call.1} parent=1 // pred_check_branch
      %18 = sbr.rel (0) target = $region5
    $region4: #{tpu_custom_call.1} parent=1 // pred_region
      %s20 = ssub.s32 16, 16
      %21 = vsyncadd [#allocation6], %s20
      %s23 = sshll.u32 %s0, 4
      %s24 = int_to_ptr.vmem [resolvable:$true] %s23
      %26 = dma.vmem_to_smem %s24, 16, [#allocation4], [#allocation6]
    $region5: #{tpu_custom_call.1} parent=1 // pred_fallthru
      _
    // Predicated region
    $region6: #{tpu_custom_call.1} parent=1 // pred_check
      _
    $region7: #{tpu_custom_call.1} parent=1 // pred_check_branch
      %28 = sbr.rel (0) target = $region9
    $region8: #{tpu_custom_call.1} parent=1 // pred_region
      _
    $region9: #{tpu_custom_call.1} parent=1 // pred_fallthru
      _
    // Predicated region
    $region10: #{tpu_custom_call.1} parent=1 // pred_check
      _
    $region11: #{tpu_custom_call.1} parent=1 // pred_check_branch
      %30 = sbr.rel (0) target = $region13
    $region12: #{tpu_custom_call.1} parent=1 // pred_region
      _
    $region13: #{tpu_custom_call.1} parent=1 // pred_fallthru
      _
    // Predicated region
    $region14: #{tpu_custom_call.1} parent=1 // pred_check
      _
    $region15: #{tpu_custom_call.1} parent=1 // pred_check_branch
      %32 = sbr.rel (0) target = $region17
    $region16: #{tpu_custom_call.1} parent=1 // pred_region
      _
    $region17: #{tpu_custom_call.1} parent=1 // pred_fallthru
      _
    // Predicated region
    $region18: #{tpu_custom_call.1} parent=1 // pred_check
      _
    $region19: #{tpu_custom_call.1} parent=1 // pred_check_branch
      %34 = sbr.rel (0) target = $region21
    $region20: #{tpu_custom_call.1} parent=1 // pred_region
      _
    $region21: #{tpu_custom_call.1} parent=1 // pred_fallthru
      _
    // Predicated region
    $region22: #{tpu_custom_call.1} parent=1 // pred_check
      _
    $region23: #{tpu_custom_call.1} parent=1 // pred_check_branch
      %36 = sbr.rel (0) target = $region25
    $region24: #{tpu_custom_call.1} parent=1 // pred_region
      _
    $region25: #{tpu_custom_call.1} parent=1 // pred_fallthru
      _
    // Predicated region
    $region26: #{tpu_custom_call.1} parent=1 // pred_check
      _
    $region27: #{tpu_custom_call.1} parent=1 // pred_check_branch
      %38 = sbr.rel (0) target = $region29
    $region28: #{tpu_custom_call.1} parent=1 // pred_region
      %39 = dma.done [#allocation6], 16
    $region29: #{tpu_custom_call.1} parent=1 // pred_fallthru
      _
    %40 = sfence
    %v41 = vld [vmem:[%s2] sm:$0xff]
    %v42 = vld [vmem:[%s2 + $0x8] sm:$0xff]
    %v43 = vld [vmem:[%s4] sm:$0xff]
    %v44 = vld [vmem:[%s4 + $0x8] sm:$0xff]
    %46 = vset.pattern.permute.xlu0 0
    %47 = vperm.xlu0 %46, %v43
    %v48 = vpop.permute.xlu0 %47
    %51 = vset.pattern.permute.xlu0 0
    %52 = vperm.xlu0 %51, %v44
    %v53 = vpop.permute.xlu0 %52
    %v55 = vmul.f32 %v41, %v48
    %v56 = vmul.f32 %v42, %v53
    %v57 = vld [vmem:[%s3] sm:$0xff]
    %v58 = vld [vmem:[%s3 + $0x8] sm:$0xff]
    %v59 = vld [vmem:[%s5] sm:$0xff]
    %v60 = vld [vmem:[%s5 + $0x8] sm:$0xff]
    %62 = vset.pattern.permute.xlu0 0
    %63 = vperm.xlu0 %62, %v59
    %v64 = vpop.permute.xlu0 %63
    %67 = vset.pattern.permute.xlu0 0
    %68 = vperm.xlu0 %67, %v60
    %v69 = vpop.permute.xlu0 %68
    %v71 = vmul.f32 %v57, %v64
    %v72 = vmul.f32 %v58, %v69
    %vm73 = vcmask 254976
    %74 = vst.msk [vmem:[#allocation2] sm:$0x3] %vm73, 0.0
    %75 = vst.msk [vmem:[#allocation2 + $0x10] sm:$0x3] %vm73, 0.0
    %76 = vst.msk [vmem:[#allocation2 + $0x20] sm:$0x3] %vm73, 0.0
    %77 = vst.msk [vmem:[#allocation2 + $0x30] sm:$0x3] %vm73, 0.0
    %78 = vst.msk [vmem:[#allocation2 + $0xa] sm:$0x3] %vm73, 0.0
    %79 = vst.msk [vmem:[#allocation2 + $0x1a] sm:$0x3] %vm73, 0.0
    %80 = vst.msk [vmem:[#allocation2 + $0x2a] sm:$0x3] %vm73, 0.0
    %81 = vst.msk [vmem:[#allocation2 + $0x3a] sm:$0x3] %vm73, 0.0
    %vm82 = vcmask 261120
    %83 = vst.msk [vmem:[#allocation2 + $0x2] sm:$0xff] %vm82, %v55
    %84 = vst.msk [vmem:[#allocation2 + $0x12] sm:$0xff] %vm82, %v56
    %s85 = scalar_lea.vmem [#allocation2], 32
    %86 = vst.msk [vmem:[%s85 + $0x2] sm:$0xff] %vm82, %v71
    %87 = vst.msk [vmem:[%s85 + $0x12] sm:$0xff] %vm82, %v72
    %s88 = sld [smem:[#allocation3]]
    %s89 = sld [smem:[#allocation4]]
    %v90 = vld [vmem:[#allocation2] sm:$0xff]
    %v91 = vld [vmem:[#allocation2 + $0x8] sm:$0x3]
    %v92 = vld [vmem:[#allocation2 + $0x10] sm:$0xff]
    %v93 = vld [vmem:[#allocation2 + $0x18] sm:$0x3]
    %v94 = vld [vmem:[#allocation2 + $0x20] sm:$0xff]
    %v95 = vld [vmem:[#allocation2 + $0x28] sm:$0x3]
    %v96 = vld [vmem:[#allocation2 + $0x30] sm:$0xff]
    %v97 = vld [vmem:[#allocation2 + $0x38] sm:$0x3]
    %v98 = vstv %s89
    %v99 = vmul.f32 %v98, %v90
    %v100 = vmul.f32 %v98, %v91
    %v101 = vmul.f32 %v98, %v92
    %v102 = vmul.f32 %v98, %v93
    %v103 = vmul.f32 %v98, %v94
    %v104 = vmul.f32 %v98, %v95
    %v105 = vmul.f32 %v98, %v96
    %v106 = vmul.f32 %v98, %v97
    %s107 = sld [smem:[#allocation4 + $0x1]]
    %v108 = vld [vmem:[#allocation2 + $0x1] sm:$0xff]
    %v109 = vld [vmem:[#allocation2 + $0x9] sm:$0x3]
    %v110 = vld [vmem:[#allocation2 + $0x11] sm:$0xff]
    %v111 = vld [vmem:[#allocation2 + $0x19] sm:$0x3]
    %v112 = vld [vmem:[#allocation2 + $0x21] sm:$0xff]
    %v113 = vld [vmem:[#allocation2 + $0x29] sm:$0x3]
    %v114 = vld [vmem:[#allocation2 + $0x31] sm:$0xff]
    %v115 = vld [vmem:[#allocation2 + $0x39] sm:$0x3]
    %v116 = vstv %s107
    %v117 = vmul.f32 %v116, %v108
    %v118 = vmul.f32 %v116, %v109
    %v119 = vmul.f32 %v116, %v110
    %v120 = vmul.f32 %v116, %v111
    %v121 = vmul.f32 %v116, %v112
    %v122 = vmul.f32 %v116, %v113
    %v123 = vmul.f32 %v116, %v114
    %v124 = vmul.f32 %v116, %v115
    %v125 = vadd.f32 %v99, %v117
    %v126 = vadd.f32 %v100, %v118
    %v127 = vadd.f32 %v101, %v119
    %v128 = vadd.f32 %v102, %v120
    %v129 = vadd.f32 %v103, %v121
    %v130 = vadd.f32 %v104, %v122
    %v131 = vadd.f32 %v105, %v123
    %v132 = vadd.f32 %v106, %v124
    %s133 = sld [smem:[#allocation4 + $0x2]]
    %v134 = vld [vmem:[#allocation2 + $0x2] sm:$0xff]
    %v135 = vld [vmem:[#allocation2 + $0xa] sm:$0x3]
    %v136 = vld [vmem:[#allocation2 + $0x12] sm:$0xff]
    %v137 = vld [vmem:[#allocation2 + $0x1a] sm:$0x3]
    %v138 = vld [vmem:[#allocation2 + $0x22] sm:$0xff]
    %v139 = vld [vmem:[#allocation2 + $0x2a] sm:$0x3]
    %v140 = vld [vmem:[#allocation2 + $0x32] sm:$0xff]
    %v141 = vld [vmem:[#allocation2 + $0x3a] sm:$0x3]
    %v142 = vstv %s133
    %v143 = vmul.f32 %v142, %v134
    %v144 = vmul.f32 %v142, %v135
    %v145 = vmul.f32 %v142, %v136
    %v146 = vmul.f32 %v142, %v137
    %v147 = vmul.f32 %v142, %v138
    %v148 = vmul.f32 %v142, %v139
    %v149 = vmul.f32 %v142, %v140
    %v150 = vmul.f32 %v142, %v141
    %v151 = vadd.f32 %v125, %v143
    %v152 = vadd.f32 %v126, %v144
    %v153 = vadd.f32 %v127, %v145
    %v154 = vadd.f32 %v128, %v146
    %v155 = vadd.f32 %v129, %v147
    %v156 = vadd.f32 %v130, %v148
    %v157 = vadd.f32 %v131, %v149
    %v158 = vadd.f32 %v132, %v150
    %v159 = vstv %s88
    %v160 = vadd.f32 %v151, %v159
    %v161 = vadd.f32 %v152, %v159
    %v162 = vadd.f32 %v153, %v159
    %v163 = vadd.f32 %v154, %v159
    %v164 = vadd.f32 %v155, %v159
    %v165 = vadd.f32 %v156, %v159
    %v166 = vadd.f32 %v157, %v159
    %v167 = vadd.f32 %v158, %v159
    %v168 = vtanh.pop %v160
    %v169 = vtanh.pop %v161
    %v170 = vtanh.pop %v162
    %v171 = vtanh.pop %v163
    %v172 = vtanh.pop %v164
    %v173 = vtanh.pop %v165
    %v174 = vtanh.pop %v166
    %v175 = vtanh.pop %v167
    %v176 = vmul.f32 %v168, %v168
    %v177 = vmul.f32 %v169, %v169
    %v178 = vmul.f32 %v170, %v170
    %v179 = vmul.f32 %v171, %v171
    %v180 = vsel %vm82, %v176, 0.0
    %181 = vadd.xlane.f32.xlu0 %v180
    %v182 = vpop.xlane.xlu0 %181
    %v183 = vsel %vm73, %v177, 0.0
    %184 = vadd.xlane.f32.xlu0 %v183
    %v185 = vpop.xlane.xlu0 %184
    %v186 = vsel %vm82, %v178, 0.0
    %187 = vadd.xlane.f32.xlu0 %v186
    %v188 = vpop.xlane.xlu0 %187
    %v189 = vsel %vm73, %v179, 0.0
    %190 = vadd.xlane.f32.xlu0 %v189
    %v191 = vpop.xlane.xlu0 %190
    %v192 = vmul.f32 %v172, %v172
    %v193 = vmul.f32 %v173, %v173
    %v194 = vmul.f32 %v174, %v174
    %v195 = vmul.f32 %v175, %v175
    %v196 = vsel %vm82, %v192, 0.0
    %197 = vadd.xlane.f32.xlu0 %v196
    %v198 = vpop.xlane.xlu0 %197
    %v199 = vsel %vm73, %v193, 0.0
    %200 = vadd.xlane.f32.xlu0 %v199
    %v201 = vpop.xlane.xlu0 %200
    %v202 = vsel %vm82, %v194, 0.0
    %203 = vadd.xlane.f32.xlu0 %v202
    %v204 = vpop.xlane.xlu0 %203
    %v205 = vsel %vm73, %v195, 0.0
    %206 = vadd.xlane.f32.xlu0 %v205
    %v207 = vpop.xlane.xlu0 %206
    %v209 = vsel %vm82, %v168, 0
    %v212 = vsel %vm82, %v169, 0
    %v215 = vsel %vm82, %v172, 0
    %v218 = vsel %vm82, %v173, 0
    %220 = vmatprep.subr.mxu0 0.0
    %221 = vmatpush1.xpose.msra.mxu0 0.0
    %222 = vmatprep.subr.mxu0 0.0
    %223 = vmatpush1.xpose.msra.mxu0 0.0
    %224 = vmatprep.subr.mxu0 0.0
    %225 = vmatpush1.xpose.msra.mxu0 0.0
    %226 = vmatprep.subr.mxu0 0.0
    %227 = vmatpush1.xpose.msra.mxu0 0.0
    %228 = vmatprep.subr.mxu0 0.0
    %229 = vmatpush1.xpose.msra.mxu0 0.0
    %230 = vmatprep.subr.mxu0 0.0
    %231 = vmatpush1.xpose.msra.mxu0 0.0
    %232 = vmatprep.subr.mxu0 0.0
    %233 = vmatpush1.xpose.msra.mxu0 0.0
    %234 = vmatprep.subr.mxu0 0.0
    %235 = vmatpush1.xpose.msra.mxu0 0.0
    %236 = vmatprep.subr.mxu0 0.0
    %237 = vmatpush1.xpose.msra.mxu0 0.0
    %238 = vmatprep.subr.mxu0 0.0
    %239 = vmatpush1.xpose.msra.mxu0 0.0
    %240 = vmatprep.subr.mxu0 0.0
    %241 = vmatpush1.xpose.msra.mxu0 0.0
    %242 = vmatprep.subr.mxu0 0.0
    %243 = vmatpush1.xpose.msra.mxu0 0.0
    %244 = vmatprep.subr.mxu0 0.0
    %245 = vmatpush1.xpose.msra.mxu0 0.0
    %246 = vmatprep.subr.mxu0 0.0
    %247 = vmatpush1.xpose.msra.mxu0 0.0
    %248 = vmatprep.subr.mxu0 0.0
    %v249 = vand.u32 %v218, 4294901760
    %250 = vmatpush1.xpose.msra.mxu0 %v249
    %251 = vmatprep.subr.mxu0 0.0
    %v252 = vand.u32 %v215, 4294901760
    %253 = vmatpush1.xpose.msra.mxu0 %v252
    %254 = vmatprep.subr.mxu0 0.0
    %255 = vmatpush2.xpose.msra.mxu0 0.0
    %256 = vmatprep.subr.mxu0 0.0
    %257 = vmatpush2.xpose.msra.mxu0 0.0
    %258 = vmatprep.subr.mxu0 0.0
    %259 = vmatpush2.xpose.msra.mxu0 0.0
    %260 = vmatprep.subr.mxu0 0.0
    %261 = vmatpush2.xpose.msra.mxu0 0.0
    %262 = vmatprep.subr.mxu0 0.0
    %263 = vmatpush2.xpose.msra.mxu0 0.0
    %264 = vmatprep.subr.mxu0 0.0
    %265 = vmatpush2.xpose.msra.mxu0 0.0
    %266 = vmatprep.subr.mxu0 0.0
    %267 = vmatpush2.xpose.msra.mxu0 0.0
    %268 = vmatprep.subr.mxu0 0.0
    %269 = vmatpush2.xpose.msra.mxu0 0.0
    %270 = vmatprep.subr.mxu0 0.0
    %271 = vmatpush2.xpose.msra.mxu0 0.0
    %272 = vmatprep.subr.mxu0 0.0
    %273 = vmatpush2.xpose.msra.mxu0 0.0
    %274 = vmatprep.subr.mxu0 0.0
    %275 = vmatpush2.xpose.msra.mxu0 0.0
    %276 = vmatprep.subr.mxu0 0.0
    %277 = vmatpush2.xpose.msra.mxu0 0.0
    %278 = vmatprep.subr.mxu0 0.0
    %279 = vmatpush2.xpose.msra.mxu0 0.0
    %280 = vmatprep.subr.mxu0 0.0
    %281 = vmatpush2.xpose.msra.mxu0 0.0
    %282 = vmatprep.subr.mxu0 0.0
    %283 = vmatpush2.xpose.msra.mxu0 0.0
    %284 = vmatprep.subr.mxu0 0.0
    %285 = vmatpush2.xpose.msra.mxu0 0.0
    %286 = vmatprep.mubr.f32.mxu0 0.0
    %v287 = vand.u32 %v209, 4294901760
    %v288 = vsub.f32 %v209, %v287
    %v289 = vand.u32 %v288, 4294901760
    %v290 = vsub.f32 %v288, %v289
    %v291 = vand.u32 %v290, 4294901760
    %292 = vmatmul.mubr.f32.gmra.mxu0 %v291
    %v293 = vpop.f32.mrf.mxu0
    %v294 = vadd.f32 0.0, %v293
    %v295 = vpop.f32.mrf.mxu0
    %296 = vmatprep.mubr.f32.mxu0 0.0
    %v297 = vand.u32 %v212, 4294901760
    %v298 = vsub.f32 %v212, %v297
    %v299 = vand.u32 %v298, 4294901760
    %v300 = vsub.f32 %v298, %v299
    %v301 = vand.u32 %v300, 4294901760
    %302 = vmatmul.mubr.f32.gmra.mxu0 %v301
    %v303 = vpop.f32.mrf.mxu0
    %v304 = vadd.f32 0.0, %v303
    %v305 = vpop.f32.mrf.mxu0
    %306 = vdwg.mxu0
    %307 = vmatprep.subr.mxu0 0.0
    %308 = vmatpush1.xpose.msra.mxu0 0.0
    %309 = vmatprep.subr.mxu0 0.0
    %310 = vmatpush1.xpose.msra.mxu0 0.0
    %311 = vmatprep.subr.mxu0 0.0
    %312 = vmatpush1.xpose.msra.mxu0 0.0
    %313 = vmatprep.subr.mxu0 0.0
    %314 = vmatpush1.xpose.msra.mxu0 0.0
    %315 = vmatprep.subr.mxu0 0.0
    %316 = vmatpush1.xpose.msra.mxu0 0.0
    %317 = vmatprep.subr.mxu0 0.0
    %318 = vmatpush1.xpose.msra.mxu0 0.0
    %319 = vmatprep.subr.mxu0 0.0
    %320 = vmatpush1.xpose.msra.mxu0 0.0
    %321 = vmatprep.subr.mxu0 0.0
    %322 = vmatpush1.xpose.msra.mxu0 0.0
    %323 = vmatprep.subr.mxu0 0.0
    %324 = vmatpush1.xpose.msra.mxu0 0.0
    %325 = vmatprep.subr.mxu0 0.0
    %326 = vmatpush1.xpose.msra.mxu0 0.0
    %327 = vmatprep.subr.mxu0 0.0
    %328 = vmatpush1.xpose.msra.mxu0 0.0
    %329 = vmatprep.subr.mxu0 0.0
    %330 = vmatpush1.xpose.msra.mxu0 0.0
    %331 = vmatprep.subr.mxu0 0.0
    %332 = vmatpush1.xpose.msra.mxu0 0.0
    %333 = vmatprep.subr.mxu0 0.0
    %334 = vmatpush1.xpose.msra.mxu0 0.0
    %335 = vmatprep.subr.mxu0 0.0
    %v336 = vand.u32 %v218, 4294901760
    %v337 = vsub.f32 %v218, %v336
    %v338 = vand.u32 %v337, 4294901760
    %v339 = vsub.f32 %v337, %v338
    %v340 = vand.u32 %v339, 4294901760
    %341 = vmatpush1.xpose.msra.mxu0 %v340
    %342 = vmatprep.subr.mxu0 0.0
    %v343 = vand.u32 %v215, 4294901760
    %v344 = vsub.f32 %v215, %v343
    %v345 = vand.u32 %v344, 4294901760
    %v346 = vsub.f32 %v344, %v345
    %v347 = vand.u32 %v346, 4294901760
    %348 = vmatpush1.xpose.msra.mxu0 %v347
    %349 = vmatprep.subr.mxu0 0.0
    %350 = vmatpush2.xpose.msra.mxu0 0.0
    %351 = vmatprep.subr.mxu0 0.0
    %352 = vmatpush2.xpose.msra.mxu0 0.0
    %353 = vmatprep.subr.mxu0 0.0
    %354 = vmatpush2.xpose.msra.mxu0 0.0
    %355 = vmatprep.subr.mxu0 0.0
    %356 = vmatpush2.xpose.msra.mxu0 0.0
    %357 = vmatprep.subr.mxu0 0.0
    %358 = vmatpush2.xpose.msra.mxu0 0.0
    %359 = vmatprep.subr.mxu0 0.0
    %360 = vmatpush2.xpose.msra.mxu0 0.0
    %361 = vmatprep.subr.mxu0 0.0
    %362 = vmatpush2.xpose.msra.mxu0 0.0
    %363 = vmatprep.subr.mxu0 0.0
    %364 = vmatpush2.xpose.msra.mxu0 0.0
    %365 = vmatprep.subr.mxu0 0.0
    %366 = vmatpush2.xpose.msra.mxu0 0.0
    %367 = vmatprep.subr.mxu0 0.0
    %368 = vmatpush2.xpose.msra.mxu0 0.0
    %369 = vmatprep.subr.mxu0 0.0
    %370 = vmatpush2.xpose.msra.mxu0 0.0
    %371 = vmatprep.subr.mxu0 0.0
    %372 = vmatpush2.xpose.msra.mxu0 0.0
    %373 = vmatprep.subr.mxu0 0.0
    %374 = vmatpush2.xpose.msra.mxu0 0.0
    %375 = vmatprep.subr.mxu0 0.0
    %376 = vmatpush2.xpose.msra.mxu0 0.0
    %377 = vmatprep.subr.mxu0 0.0
    %378 = vmatpush2.xpose.msra.mxu0 0.0
    %379 = vmatprep.subr.mxu0 0.0
    %380 = vmatpush2.xpose.msra.mxu0 0.0
    %381 = vmatprep.mubr.f32.mxu0 0.0
    %v382 = vand.u32 %v209, 4294901760
    %383 = vmatmul.mubr.f32.gmra.mxu0 %v382
    %v384 = vpop.f32.mrf.mxu0
    %v385 = vadd.f32 %v294, %v384
    %v386 = vpop.f32.mrf.mxu0
    %387 = vmatprep.mubr.f32.mxu0 0.0
    %v388 = vand.u32 %v212, 4294901760
    %389 = vmatmul.mubr.f32.gmra.mxu0 %v388
    %v390 = vpop.f32.mrf.mxu0
    %v391 = vadd.f32 %v304, %v390
    %v392 = vpop.f32.mrf.mxu0
    %393 = vdwg.mxu0
    %394 = vmatprep.subr.mxu0 0.0
    %395 = vmatpush1.xpose.msra.mxu0 0.0
    %396 = vmatprep.subr.mxu0 0.0
    %397 = vmatpush1.xpose.msra.mxu0 0.0
    %398 = vmatprep.subr.mxu0 0.0
    %399 = vmatpush1.xpose.msra.mxu0 0.0
    %400 = vmatprep.subr.mxu0 0.0
    %401 = vmatpush1.xpose.msra.mxu0 0.0
    %402 = vmatprep.subr.mxu0 0.0
    %403 = vmatpush1.xpose.msra.mxu0 0.0
    %404 = vmatprep.subr.mxu0 0.0
    %405 = vmatpush1.xpose.msra.mxu0 0.0
    %406 = vmatprep.subr.mxu0 0.0
    %407 = vmatpush1.xpose.msra.mxu0 0.0
    %408 = vmatprep.subr.mxu0 0.0
    %409 = vmatpush1.xpose.msra.mxu0 0.0
    %410 = vmatprep.subr.mxu0 0.0
    %411 = vmatpush1.xpose.msra.mxu0 0.0
    %412 = vmatprep.subr.mxu0 0.0
    %413 = vmatpush1.xpose.msra.mxu0 0.0
    %414 = vmatprep.subr.mxu0 0.0
    %415 = vmatpush1.xpose.msra.mxu0 0.0
    %416 = vmatprep.subr.mxu0 0.0
    %417 = vmatpush1.xpose.msra.mxu0 0.0
    %418 = vmatprep.subr.mxu0 0.0
    %419 = vmatpush1.xpose.msra.mxu0 0.0
    %420 = vmatprep.subr.mxu0 0.0
    %421 = vmatpush1.xpose.msra.mxu0 0.0
    %422 = vmatprep.subr.mxu0 0.0
    %v423 = vand.u32 %v218, 4294901760
    %v424 = vsub.f32 %v218, %v423
    %425 = vmatpush1.xpose.msra.mxu0 %v424
    %426 = vmatprep.subr.mxu0 0.0
    %v427 = vand.u32 %v215, 4294901760
    %v428 = vsub.f32 %v215, %v427
    %429 = vmatpush1.xpose.msra.mxu0 %v428
    %430 = vmatprep.subr.mxu0 0.0
    %431 = vmatpush2.xpose.msra.mxu0 0.0
    %432 = vmatprep.subr.mxu0 0.0
    %433 = vmatpush2.xpose.msra.mxu0 0.0
    %434 = vmatprep.subr.mxu0 0.0
    %435 = vmatpush2.xpose.msra.mxu0 0.0
    %436 = vmatprep.subr.mxu0 0.0
    %437 = vmatpush2.xpose.msra.mxu0 0.0
    %438 = vmatprep.subr.mxu0 0.0
    %439 = vmatpush2.xpose.msra.mxu0 0.0
    %440 = vmatprep.subr.mxu0 0.0
    %441 = vmatpush2.xpose.msra.mxu0 0.0
    %442 = vmatprep.subr.mxu0 0.0
    %443 = vmatpush2.xpose.msra.mxu0 0.0
    %444 = vmatprep.subr.mxu0 0.0
    %445 = vmatpush2.xpose.msra.mxu0 0.0
    %446 = vmatprep.subr.mxu0 0.0
    %447 = vmatpush2.xpose.msra.mxu0 0.0
    %448 = vmatprep.subr.mxu0 0.0
    %449 = vmatpush2.xpose.msra.mxu0 0.0
    %450 = vmatprep.subr.mxu0 0.0
    %451 = vmatpush2.xpose.msra.mxu0 0.0
    %452 = vmatprep.subr.mxu0 0.0
    %453 = vmatpush2.xpose.msra.mxu0 0.0
    %454 = vmatprep.subr.mxu0 0.0
    %455 = vmatpush2.xpose.msra.mxu0 0.0
    %456 = vmatprep.subr.mxu0 0.0
    %457 = vmatpush2.xpose.msra.mxu0 0.0
    %458 = vmatprep.subr.mxu0 0.0
    %459 = vmatpush2.xpose.msra.mxu0 0.0
    %460 = vmatprep.subr.mxu0 0.0
    %461 = vmatpush2.xpose.msra.mxu0 0.0
    %462 = vmatprep.mubr.f32.mxu0 0.0
    %v463 = vand.u32 %v209, 4294901760
    %v464 = vsub.f32 %v209, %v463
    %465 = vmatmul.mubr.f32.gmra.mxu0 %v464
    %v466 = vpop.f32.mrf.mxu0
    %v467 = vadd.f32 %v385, %v466
    %v468 = vpop.f32.mrf.mxu0
    %469 = vmatprep.mubr.f32.mxu0 0.0
    %v470 = vand.u32 %v212, 4294901760
    %v471 = vsub.f32 %v212, %v470
    %472 = vmatmul.mubr.f32.gmra.mxu0 %v471
    %v473 = vpop.f32.mrf.mxu0
    %v474 = vadd.f32 %v391, %v473
    %v475 = vpop.f32.mrf.mxu0
    %476 = vdwg.mxu0
    %477 = vmatprep.subr.mxu0 0.0
    %478 = vmatpush1.xpose.msra.mxu0 0.0
    %479 = vmatprep.subr.mxu0 0.0
    %480 = vmatpush1.xpose.msra.mxu0 0.0
    %481 = vmatprep.subr.mxu0 0.0
    %482 = vmatpush1.xpose.msra.mxu0 0.0
    %483 = vmatprep.subr.mxu0 0.0
    %484 = vmatpush1.xpose.msra.mxu0 0.0
    %485 = vmatprep.subr.mxu0 0.0
    %486 = vmatpush1.xpose.msra.mxu0 0.0
    %487 = vmatprep.subr.mxu0 0.0
    %488 = vmatpush1.xpose.msra.mxu0 0.0
    %489 = vmatprep.subr.mxu0 0.0
    %490 = vmatpush1.xpose.msra.mxu0 0.0
    %491 = vmatprep.subr.mxu0 0.0
    %492 = vmatpush1.xpose.msra.mxu0 0.0
    %493 = vmatprep.subr.mxu0 0.0
    %494 = vmatpush1.xpose.msra.mxu0 0.0
    %495 = vmatprep.subr.mxu0 0.0
    %496 = vmatpush1.xpose.msra.mxu0 0.0
    %497 = vmatprep.subr.mxu0 0.0
    %498 = vmatpush1.xpose.msra.mxu0 0.0
    %499 = vmatprep.subr.mxu0 0.0
    %500 = vmatpush1.xpose.msra.mxu0 0.0
    %501 = vmatprep.subr.mxu0 0.0
    %502 = vmatpush1.xpose.msra.mxu0 0.0
    %503 = vmatprep.subr.mxu0 0.0
    %504 = vmatpush1.xpose.msra.mxu0 0.0
    %505 = vmatprep.subr.mxu0 0.0
    %v506 = vand.u32 %v218, 4294901760
    %507 = vmatpush1.xpose.msra.mxu0 %v506
    %508 = vmatprep.subr.mxu0 0.0
    %v509 = vand.u32 %v215, 4294901760
    %510 = vmatpush1.xpose.msra.mxu0 %v509
    %511 = vmatprep.subr.mxu0 0.0
    %512 = vmatpush2.xpose.msra.mxu0 0.0
    %513 = vmatprep.subr.mxu0 0.0
    %514 = vmatpush2.xpose.msra.mxu0 0.0
    %515 = vmatprep.subr.mxu0 0.0
    %516 = vmatpush2.xpose.msra.mxu0 0.0
    %517 = vmatprep.subr.mxu0 0.0
    %518 = vmatpush2.xpose.msra.mxu0 0.0
    %519 = vmatprep.subr.mxu0 0.0
    %520 = vmatpush2.xpose.msra.mxu0 0.0
    %521 = vmatprep.subr.mxu0 0.0
    %522 = vmatpush2.xpose.msra.mxu0 0.0
    %523 = vmatprep.subr.mxu0 0.0
    %524 = vmatpush2.xpose.msra.mxu0 0.0
    %525 = vmatprep.subr.mxu0 0.0
    %526 = vmatpush2.xpose.msra.mxu0 0.0
    %527 = vmatprep.subr.mxu0 0.0
    %528 = vmatpush2.xpose.msra.mxu0 0.0
    %529 = vmatprep.subr.mxu0 0.0
    %530 = vmatpush2.xpose.msra.mxu0 0.0
    %531 = vmatprep.subr.mxu0 0.0
    %532 = vmatpush2.xpose.msra.mxu0 0.0
    %533 = vmatprep.subr.mxu0 0.0
    %534 = vmatpush2.xpose.msra.mxu0 0.0
    %535 = vmatprep.subr.mxu0 0.0
    %536 = vmatpush2.xpose.msra.mxu0 0.0
    %537 = vmatprep.subr.mxu0 0.0
    %538 = vmatpush2.xpose.msra.mxu0 0.0
    %539 = vmatprep.subr.mxu0 0.0
    %540 = vmatpush2.xpose.msra.mxu0 0.0
    %541 = vmatprep.subr.mxu0 0.0
    %542 = vmatpush2.xpose.msra.mxu0 0.0
    %543 = vmatprep.mubr.f32.mxu0 0.0
    %v544 = vand.u32 %v209, 4294901760
    %v545 = vsub.f32 %v209, %v544
    %v546 = vand.u32 %v545, 4294901760
    %547 = vmatmul.mubr.f32.gmra.mxu0 %v546
    %v548 = vpop.f32.mrf.mxu0
    %v549 = vadd.f32 %v467, %v548
    %v550 = vpop.f32.mrf.mxu0
    %551 = vmatprep.mubr.f32.mxu0 0.0
    %v552 = vand.u32 %v212, 4294901760
    %v553 = vsub.f32 %v212, %v552
    %v554 = vand.u32 %v553, 4294901760
    %555 = vmatmul.mubr.f32.gmra.mxu0 %v554
    %v556 = vpop.f32.mrf.mxu0
    %v557 = vadd.f32 %v474, %v556
    %v558 = vpop.f32.mrf.mxu0
    %559 = vdwg.mxu0
    %560 = vmatprep.subr.mxu0 0.0
    %561 = vmatpush1.xpose.msra.mxu0 0.0
    %562 = vmatprep.subr.mxu0 0.0
    %563 = vmatpush1.xpose.msra.mxu0 0.0
    %564 = vmatprep.subr.mxu0 0.0
    %565 = vmatpush1.xpose.msra.mxu0 0.0
    %566 = vmatprep.subr.mxu0 0.0
    %567 = vmatpush1.xpose.msra.mxu0 0.0
    %568 = vmatprep.subr.mxu0 0.0
    %569 = vmatpush1.xpose.msra.mxu0 0.0
    %570 = vmatprep.subr.mxu0 0.0
    %571 = vmatpush1.xpose.msra.mxu0 0.0
    %572 = vmatprep.subr.mxu0 0.0
    %573 = vmatpush1.xpose.msra.mxu0 0.0
    %574 = vmatprep.subr.mxu0 0.0
    %575 = vmatpush1.xpose.msra.mxu0 0.0
    %576 = vmatprep.subr.mxu0 0.0
    %577 = vmatpush1.xpose.msra.mxu0 0.0
    %578 = vmatprep.subr.mxu0 0.0
    %579 = vmatpush1.xpose.msra.mxu0 0.0
    %580 = vmatprep.subr.mxu0 0.0
    %581 = vmatpush1.xpose.msra.mxu0 0.0
    %582 = vmatprep.subr.mxu0 0.0
    %583 = vmatpush1.xpose.msra.mxu0 0.0
    %584 = vmatprep.subr.mxu0 0.0
    %585 = vmatpush1.xpose.msra.mxu0 0.0
    %586 = vmatprep.subr.mxu0 0.0
    %587 = vmatpush1.xpose.msra.mxu0 0.0
    %588 = vmatprep.subr.mxu0 0.0
    %v589 = vand.u32 %v218, 4294901760
    %v590 = vsub.f32 %v218, %v589
    %v591 = vand.u32 %v590, 4294901760
    %592 = vmatpush1.xpose.msra.mxu0 %v591
    %593 = vmatprep.subr.mxu0 0.0
    %v594 = vand.u32 %v215, 4294901760
    %v595 = vsub.f32 %v215, %v594
    %v596 = vand.u32 %v595, 4294901760
    %597 = vmatpush1.xpose.msra.mxu0 %v596
    %598 = vmatprep.subr.mxu0 0.0
    %599 = vmatpush2.xpose.msra.mxu0 0.0
    %600 = vmatprep.subr.mxu0 0.0
    %601 = vmatpush2.xpose.msra.mxu0 0.0
    %602 = vmatprep.subr.mxu0 0.0
    %603 = vmatpush2.xpose.msra.mxu0 0.0
    %604 = vmatprep.subr.mxu0 0.0
    %605 = vmatpush2.xpose.msra.mxu0 0.0
    %606 = vmatprep.subr.mxu0 0.0
    %607 = vmatpush2.xpose.msra.mxu0 0.0
    %608 = vmatprep.subr.mxu0 0.0
    %609 = vmatpush2.xpose.msra.mxu0 0.0
    %610 = vmatprep.subr.mxu0 0.0
    %611 = vmatpush2.xpose.msra.mxu0 0.0
    %612 = vmatprep.subr.mxu0 0.0
    %613 = vmatpush2.xpose.msra.mxu0 0.0
    %614 = vmatprep.subr.mxu0 0.0
    %615 = vmatpush2.xpose.msra.mxu0 0.0
    %616 = vmatprep.subr.mxu0 0.0
    %617 = vmatpush2.xpose.msra.mxu0 0.0
    %618 = vmatprep.subr.mxu0 0.0
    %619 = vmatpush2.xpose.msra.mxu0 0.0
    %620 = vmatprep.subr.mxu0 0.0
    %621 = vmatpush2.xpose.msra.mxu0 0.0
    %622 = vmatprep.subr.mxu0 0.0
    %623 = vmatpush2.xpose.msra.mxu0 0.0
    %624 = vmatprep.subr.mxu0 0.0
    %625 = vmatpush2.xpose.msra.mxu0 0.0
    %626 = vmatprep.subr.mxu0 0.0
    %627 = vmatpush2.xpose.msra.mxu0 0.0
    %628 = vmatprep.subr.mxu0 0.0
    %629 = vmatpush2.xpose.msra.mxu0 0.0
    %630 = vmatprep.mubr.f32.mxu0 0.0
    %v631 = vand.u32 %v209, 4294901760
    %632 = vmatmul.mubr.f32.gmra.mxu0 %v631
    %v633 = vpop.f32.mrf.mxu0
    %v634 = vadd.f32 %v549, %v633
    %v635 = vpop.f32.mrf.mxu0
    %636 = vmatprep.mubr.f32.mxu0 0.0
    %v637 = vand.u32 %v212, 4294901760
    %638 = vmatmul.mubr.f32.gmra.mxu0 %v637
    %v639 = vpop.f32.mrf.mxu0
    %v640 = vadd.f32 %v557, %v639
    %v641 = vpop.f32.mrf.mxu0
    %642 = vdwg.mxu0
    %643 = vmatprep.subr.mxu0 0.0
    %644 = vmatpush1.xpose.msra.mxu0 0.0
    %645 = vmatprep.subr.mxu0 0.0
    %646 = vmatpush1.xpose.msra.mxu0 0.0
    %647 = vmatprep.subr.mxu0 0.0
    %648 = vmatpush1.xpose.msra.mxu0 0.0
    %649 = vmatprep.subr.mxu0 0.0
    %650 = vmatpush1.xpose.msra.mxu0 0.0
    %651 = vmatprep.subr.mxu0 0.0
    %652 = vmatpush1.xpose.msra.mxu0 0.0
    %653 = vmatprep.subr.mxu0 0.0
    %654 = vmatpush1.xpose.msra.mxu0 0.0
    %655 = vmatprep.subr.mxu0 0.0
    %656 = vmatpush1.xpose.msra.mxu0 0.0
    %657 = vmatprep.subr.mxu0 0.0
    %658 = vmatpush1.xpose.msra.mxu0 0.0
    %659 = vmatprep.subr.mxu0 0.0
    %660 = vmatpush1.xpose.msra.mxu0 0.0
    %661 = vmatprep.subr.mxu0 0.0
    %662 = vmatpush1.xpose.msra.mxu0 0.0
    %663 = vmatprep.subr.mxu0 0.0
    %664 = vmatpush1.xpose.msra.mxu0 0.0
    %665 = vmatprep.subr.mxu0 0.0
    %666 = vmatpush1.xpose.msra.mxu0 0.0
    %667 = vmatprep.subr.mxu0 0.0
    %668 = vmatpush1.xpose.msra.mxu0 0.0
    %669 = vmatprep.subr.mxu0 0.0
    %670 = vmatpush1.xpose.msra.mxu0 0.0
    %671 = vmatprep.subr.mxu0 0.0
    %v672 = vand.u32 %v218, 4294901760
    %673 = vmatpush1.xpose.msra.mxu0 %v672
    %674 = vmatprep.subr.mxu0 0.0
    %v675 = vand.u32 %v215, 4294901760
    %676 = vmatpush1.xpose.msra.mxu0 %v675
    %677 = vmatprep.subr.mxu0 0.0
    %678 = vmatpush2.xpose.msra.mxu0 0.0
    %679 = vmatprep.subr.mxu0 0.0
    %680 = vmatpush2.xpose.msra.mxu0 0.0
    %681 = vmatprep.subr.mxu0 0.0
    %682 = vmatpush2.xpose.msra.mxu0 0.0
    %683 = vmatprep.subr.mxu0 0.0
    %684 = vmatpush2.xpose.msra.mxu0 0.0
    %685 = vmatprep.subr.mxu0 0.0
    %686 = vmatpush2.xpose.msra.mxu0 0.0
    %687 = vmatprep.subr.mxu0 0.0
    %688 = vmatpush2.xpose.msra.mxu0 0.0
    %689 = vmatprep.subr.mxu0 0.0
    %690 = vmatpush2.xpose.msra.mxu0 0.0
    %691 = vmatprep.subr.mxu0 0.0
    %692 = vmatpush2.xpose.msra.mxu0 0.0
    %693 = vmatprep.subr.mxu0 0.0
    %694 = vmatpush2.xpose.msra.mxu0 0.0
    %695 = vmatprep.subr.mxu0 0.0
    %696 = vmatpush2.xpose.msra.mxu0 0.0
    %697 = vmatprep.subr.mxu0 0.0
    %698 = vmatpush2.xpose.msra.mxu0 0.0
    %699 = vmatprep.subr.mxu0 0.0
    %700 = vmatpush2.xpose.msra.mxu0 0.0
    %701 = vmatprep.subr.mxu0 0.0
    %702 = vmatpush2.xpose.msra.mxu0 0.0
    %703 = vmatprep.subr.mxu0 0.0
    %704 = vmatpush2.xpose.msra.mxu0 0.0
    %705 = vmatprep.subr.mxu0 0.0
    %706 = vmatpush2.xpose.msra.mxu0 0.0
    %707 = vmatprep.subr.mxu0 0.0
    %708 = vmatpush2.xpose.msra.mxu0 0.0
    %709 = vmatprep.mubr.f32.mxu0 0.0
    %v710 = vand.u32 %v209, 4294901760
    %711 = vmatmul.mubr.f32.gmra.mxu0 %v710
    %v712 = vpop.f32.mrf.mxu0
    %v713 = vadd.f32 %v634, %v712
    %v714 = vpop.f32.mrf.mxu0
    %715 = vmatprep.mubr.f32.mxu0 0.0
    %v716 = vand.u32 %v212, 4294901760
    %717 = vmatmul.mubr.f32.gmra.mxu0 %v716
    %v718 = vpop.f32.mrf.mxu0
    %v719 = vadd.f32 %v640, %v718
    %v720 = vpop.f32.mrf.mxu0
    %721 = vdwg.mxu0
    %v723 = vsel %vm82, %v170, 0
    %v726 = vsel %vm82, %v171, 0
    %v729 = vsel %vm82, %v174, 0
    %v732 = vsel %vm82, %v175, 0
    %734 = vmatprep.subr.mxu0 0.0
    %735 = vmatpush1.xpose.msra.mxu0 0.0
    %736 = vmatprep.subr.mxu0 0.0
    %737 = vmatpush1.xpose.msra.mxu0 0.0
    %738 = vmatprep.subr.mxu0 0.0
    %739 = vmatpush1.xpose.msra.mxu0 0.0
    %740 = vmatprep.subr.mxu0 0.0
    %741 = vmatpush1.xpose.msra.mxu0 0.0
    %742 = vmatprep.subr.mxu0 0.0
    %743 = vmatpush1.xpose.msra.mxu0 0.0
    %744 = vmatprep.subr.mxu0 0.0
    %745 = vmatpush1.xpose.msra.mxu0 0.0
    %746 = vmatprep.subr.mxu0 0.0
    %747 = vmatpush1.xpose.msra.mxu0 0.0
    %748 = vmatprep.subr.mxu0 0.0
    %749 = vmatpush1.xpose.msra.mxu0 0.0
    %750 = vmatprep.subr.mxu0 0.0
    %751 = vmatpush1.xpose.msra.mxu0 0.0
    %752 = vmatprep.subr.mxu0 0.0
    %753 = vmatpush1.xpose.msra.mxu0 0.0
    %754 = vmatprep.subr.mxu0 0.0
    %755 = vmatpush1.xpose.msra.mxu0 0.0
    %756 = vmatprep.subr.mxu0 0.0
    %757 = vmatpush1.xpose.msra.mxu0 0.0
    %758 = vmatprep.subr.mxu0 0.0
    %759 = vmatpush1.xpose.msra.mxu0 0.0
    %760 = vmatprep.subr.mxu0 0.0
    %761 = vmatpush1.xpose.msra.mxu0 0.0
    %762 = vmatprep.subr.mxu0 0.0
    %v763 = vand.u32 %v732, 4294901760
    %764 = vmatpush1.xpose.msra.mxu0 %v763
    %765 = vmatprep.subr.mxu0 0.0
    %v766 = vand.u32 %v729, 4294901760
    %767 = vmatpush1.xpose.msra.mxu0 %v766
    %768 = vmatprep.subr.mxu0 0.0
    %769 = vmatpush2.xpose.msra.mxu0 0.0
    %770 = vmatprep.subr.mxu0 0.0
    %771 = vmatpush2.xpose.msra.mxu0 0.0
    %772 = vmatprep.subr.mxu0 0.0
    %773 = vmatpush2.xpose.msra.mxu0 0.0
    %774 = vmatprep.subr.mxu0 0.0
    %775 = vmatpush2.xpose.msra.mxu0 0.0
    %776 = vmatprep.subr.mxu0 0.0
    %777 = vmatpush2.xpose.msra.mxu0 0.0
    %778 = vmatprep.subr.mxu0 0.0
    %779 = vmatpush2.xpose.msra.mxu0 0.0
    %780 = vmatprep.subr.mxu0 0.0
    %781 = vmatpush2.xpose.msra.mxu0 0.0
    %782 = vmatprep.subr.mxu0 0.0
    %783 = vmatpush2.xpose.msra.mxu0 0.0
    %784 = vmatprep.subr.mxu0 0.0
    %785 = vmatpush2.xpose.msra.mxu0 0.0
    %786 = vmatprep.subr.mxu0 0.0
    %787 = vmatpush2.xpose.msra.mxu0 0.0
    %788 = vmatprep.subr.mxu0 0.0
    %789 = vmatpush2.xpose.msra.mxu0 0.0
    %790 = vmatprep.subr.mxu0 0.0
    %791 = vmatpush2.xpose.msra.mxu0 0.0
    %792 = vmatprep.subr.mxu0 0.0
    %793 = vmatpush2.xpose.msra.mxu0 0.0
    %794 = vmatprep.subr.mxu0 0.0
    %795 = vmatpush2.xpose.msra.mxu0 0.0
    %796 = vmatprep.subr.mxu0 0.0
    %797 = vmatpush2.xpose.msra.mxu0 0.0
    %798 = vmatprep.subr.mxu0 0.0
    %799 = vmatpush2.xpose.msra.mxu0 0.0
    %800 = vmatprep.mubr.f32.mxu0 0.0
    %v801 = vand.u32 %v723, 4294901760
    %v802 = vsub.f32 %v723, %v801
    %v803 = vand.u32 %v802, 4294901760
    %v804 = vsub.f32 %v802, %v803
    %v805 = vand.u32 %v804, 4294901760
    %806 = vmatmul.mubr.f32.gmra.mxu0 %v805
    %v807 = vpop.f32.mrf.mxu0
    %v808 = vadd.f32 0.0, %v807
    %v809 = vpop.f32.mrf.mxu0
    %810 = vmatprep.mubr.f32.mxu0 0.0
    %v811 = vand.u32 %v726, 4294901760
    %v812 = vsub.f32 %v726, %v811
    %v813 = vand.u32 %v812, 4294901760
    %v814 = vsub.f32 %v812, %v813
    %v815 = vand.u32 %v814, 4294901760
    %816 = vmatmul.mubr.f32.gmra.mxu0 %v815
    %v817 = vpop.f32.mrf.mxu0
    %v818 = vadd.f32 0.0, %v817
    %v819 = vpop.f32.mrf.mxu0
    %820 = vdwg.mxu0
    %821 = vmatprep.subr.mxu0 0.0
    %822 = vmatpush1.xpose.msra.mxu0 0.0
    %823 = vmatprep.subr.mxu0 0.0
    %824 = vmatpush1.xpose.msra.mxu0 0.0
    %825 = vmatprep.subr.mxu0 0.0
    %826 = vmatpush1.xpose.msra.mxu0 0.0
    %827 = vmatprep.subr.mxu0 0.0
    %828 = vmatpush1.xpose.msra.mxu0 0.0
    %829 = vmatprep.subr.mxu0 0.0
    %830 = vmatpush1.xpose.msra.mxu0 0.0
    %831 = vmatprep.subr.mxu0 0.0
    %832 = vmatpush1.xpose.msra.mxu0 0.0
    %833 = vmatprep.subr.mxu0 0.0
    %834 = vmatpush1.xpose.msra.mxu0 0.0
    %835 = vmatprep.subr.mxu0 0.0
    %836 = vmatpush1.xpose.msra.mxu0 0.0
    %837 = vmatprep.subr.mxu0 0.0
    %838 = vmatpush1.xpose.msra.mxu0 0.0
    %839 = vmatprep.subr.mxu0 0.0
    %840 = vmatpush1.xpose.msra.mxu0 0.0
    %841 = vmatprep.subr.mxu0 0.0
    %842 = vmatpush1.xpose.msra.mxu0 0.0
    %843 = vmatprep.subr.mxu0 0.0
    %844 = vmatpush1.xpose.msra.mxu0 0.0
    %845 = vmatprep.subr.mxu0 0.0
    %846 = vmatpush1.xpose.msra.mxu0 0.0
    %847 = vmatprep.subr.mxu0 0.0
    %848 = vmatpush1.xpose.msra.mxu0 0.0
    %849 = vmatprep.subr.mxu0 0.0
    %v850 = vand.u32 %v732, 4294901760
    %v851 = vsub.f32 %v732, %v850
    %v852 = vand.u32 %v851, 4294901760
    %v853 = vsub.f32 %v851, %v852
    %v854 = vand.u32 %v853, 4294901760
    %855 = vmatpush1.xpose.msra.mxu0 %v854
    %856 = vmatprep.subr.mxu0 0.0
    %v857 = vand.u32 %v729, 4294901760
    %v858 = vsub.f32 %v729, %v857
    %v859 = vand.u32 %v858, 4294901760
    %v860 = vsub.f32 %v858, %v859
    %v861 = vand.u32 %v860, 4294901760
    %862 = vmatpush1.xpose.msra.mxu0 %v861
    %863 = vmatprep.subr.mxu0 0.0
    %864 = vmatpush2.xpose.msra.mxu0 0.0
    %865 = vmatprep.subr.mxu0 0.0
    %866 = vmatpush2.xpose.msra.mxu0 0.0
    %867 = vmatprep.subr.mxu0 0.0
    %868 = vmatpush2.xpose.msra.mxu0 0.0
    %869 = vmatprep.subr.mxu0 0.0
    %870 = vmatpush2.xpose.msra.mxu0 0.0
    %871 = vmatprep.subr.mxu0 0.0
    %872 = vmatpush2.xpose.msra.mxu0 0.0
    %873 = vmatprep.subr.mxu0 0.0
    %874 = vmatpush2.xpose.msra.mxu0 0.0
    %875 = vmatprep.subr.mxu0 0.0
    %876 = vmatpush2.xpose.msra.mxu0 0.0
    %877 = vmatprep.subr.mxu0 0.0
    %878 = vmatpush2.xpose.msra.mxu0 0.0
    %879 = vmatprep.subr.mxu0 0.0
    %880 = vmatpush2.xpose.msra.mxu0 0.0
    %881 = vmatprep.subr.mxu0 0.0
    %882 = vmatpush2.xpose.msra.mxu0 0.0
    %883 = vmatprep.subr.mxu0 0.0
    %884 = vmatpush2.xpose.msra.mxu0 0.0
    %885 = vmatprep.subr.mxu0 0.0
    %886 = vmatpush2.xpose.msra.mxu0 0.0
    %887 = vmatprep.subr.mxu0 0.0
    %888 = vmatpush2.xpose.msra.mxu0 0.0
    %889 = vmatprep.subr.mxu0 0.0
    %890 = vmatpush2.xpose.msra.mxu0 0.0
    %891 = vmatprep.subr.mxu0 0.0
    %892 = vmatpush2.xpose.msra.mxu0 0.0
    %893 = vmatprep.subr.mxu0 0.0
    %894 = vmatpush2.xpose.msra.mxu0 0.0
    %895 = vmatprep.mubr.f32.mxu0 0.0
    %v896 = vand.u32 %v723, 4294901760
    %897 = vmatmul.mubr.f32.gmra.mxu0 %v896
    %v898 = vpop.f32.mrf.mxu0
    %v899 = vadd.f32 %v808, %v898
    %v900 = vpop.f32.mrf.mxu0
    %901 = vmatprep.mubr.f32.mxu0 0.0
    %v902 = vand.u32 %v726, 4294901760
    %903 = vmatmul.mubr.f32.gmra.mxu0 %v902
    %v904 = vpop.f32.mrf.mxu0
    %v905 = vadd.f32 %v818, %v904
    %v906 = vpop.f32.mrf.mxu0
    %907 = vdwg.mxu0
    %908 = vmatprep.subr.mxu0 0.0
    %909 = vmatpush1.xpose.msra.mxu0 0.0
    %910 = vmatprep.subr.mxu0 0.0
    %911 = vmatpush1.xpose.msra.mxu0 0.0
    %912 = vmatprep.subr.mxu0 0.0
    %913 = vmatpush1.xpose.msra.mxu0 0.0
    %914 = vmatprep.subr.mxu0 0.0
    %915 = vmatpush1.xpose.msra.mxu0 0.0
    %916 = vmatprep.subr.mxu0 0.0
    %917 = vmatpush1.xpose.msra.mxu0 0.0
    %918 = vmatprep.subr.mxu0 0.0
    %919 = vmatpush1.xpose.msra.mxu0 0.0
    %920 = vmatprep.subr.mxu0 0.0
    %921 = vmatpush1.xpose.msra.mxu0 0.0
    %922 = vmatprep.subr.mxu0 0.0
    %923 = vmatpush1.xpose.msra.mxu0 0.0
    %924 = vmatprep.subr.mxu0 0.0
    %925 = vmatpush1.xpose.msra.mxu0 0.0
    %926 = vmatprep.subr.mxu0 0.0
    %927 = vmatpush1.xpose.msra.mxu0 0.0
    %928 = vmatprep.subr.mxu0 0.0
    %929 = vmatpush1.xpose.msra.mxu0 0.0
    %930 = vmatprep.subr.mxu0 0.0
    %931 = vmatpush1.xpose.msra.mxu0 0.0
    %932 = vmatprep.subr.mxu0 0.0
    %933 = vmatpush1.xpose.msra.mxu0 0.0
    %934 = vmatprep.subr.mxu0 0.0
    %935 = vmatpush1.xpose.msra.mxu0 0.0
    %936 = vmatprep.subr.mxu0 0.0
    %v937 = vand.u32 %v732, 4294901760
    %v938 = vsub.f32 %v732, %v937
    %939 = vmatpush1.xpose.msra.mxu0 %v938
    %940 = vmatprep.subr.mxu0 0.0
    %v941 = vand.u32 %v729, 4294901760
    %v942 = vsub.f32 %v729, %v941
    %943 = vmatpush1.xpose.msra.mxu0 %v942
    %944 = vmatprep.subr.mxu0 0.0
    %945 = vmatpush2.xpose.msra.mxu0 0.0
    %946 = vmatprep.subr.mxu0 0.0
    %947 = vmatpush2.xpose.msra.mxu0 0.0
    %948 = vmatprep.subr.mxu0 0.0
    %949 = vmatpush2.xpose.msra.mxu0 0.0
    %950 = vmatprep.subr.mxu0 0.0
    %951 = vmatpush2.xpose.msra.mxu0 0.0
    %952 = vmatprep.subr.mxu0 0.0
    %953 = vmatpush2.xpose.msra.mxu0 0.0
    %954 = vmatprep.subr.mxu0 0.0
    %955 = vmatpush2.xpose.msra.mxu0 0.0
    %956 = vmatprep.subr.mxu0 0.0
    %957 = vmatpush2.xpose.msra.mxu0 0.0
    %958 = vmatprep.subr.mxu0 0.0
    %959 = vmatpush2.xpose.msra.mxu0 0.0
    %960 = vmatprep.subr.mxu0 0.0
    %961 = vmatpush2.xpose.msra.mxu0 0.0
    %962 = vmatprep.subr.mxu0 0.0
    %963 = vmatpush2.xpose.msra.mxu0 0.0
    %964 = vmatprep.subr.mxu0 0.0
    %965 = vmatpush2.xpose.msra.mxu0 0.0
    %966 = vmatprep.subr.mxu0 0.0
    %967 = vmatpush2.xpose.msra.mxu0 0.0
    %968 = vmatprep.subr.mxu0 0.0
    %969 = vmatpush2.xpose.msra.mxu0 0.0
    %970 = vmatprep.subr.mxu0 0.0
    %971 = vmatpush2.xpose.msra.mxu0 0.0
    %972 = vmatprep.subr.mxu0 0.0
    %973 = vmatpush2.xpose.msra.mxu0 0.0
    %974 = vmatprep.subr.mxu0 0.0
    %975 = vmatpush2.xpose.msra.mxu0 0.0
    %976 = vmatprep.mubr.f32.mxu0 0.0
    %v977 = vand.u32 %v723, 4294901760
    %v978 = vsub.f32 %v723, %v977
    %979 = vmatmul.mubr.f32.gmra.mxu0 %v978
    %v980 = vpop.f32.mrf.mxu0
    %v981 = vadd.f32 %v899, %v980
    %v982 = vpop.f32.mrf.mxu0
    %983 = vmatprep.mubr.f32.mxu0 0.0
    %v984 = vand.u32 %v726, 4294901760
    %v985 = vsub.f32 %v726, %v984
    %986 = vmatmul.mubr.f32.gmra.mxu0 %v985
    %v987 = vpop.f32.mrf.mxu0
    %v988 = vadd.f32 %v905, %v987
    %v989 = vpop.f32.mrf.mxu0
    %990 = vdwg.mxu0
    %991 = vmatprep.subr.mxu0 0.0
    %992 = vmatpush1.xpose.msra.mxu0 0.0
    %993 = vmatprep.subr.mxu0 0.0
    %994 = vmatpush1.xpose.msra.mxu0 0.0
    %995 = vmatprep.subr.mxu0 0.0
    %996 = vmatpush1.xpose.msra.mxu0 0.0
    %997 = vmatprep.subr.mxu0 0.0
    %998 = vmatpush1.xpose.msra.mxu0 0.0
    %999 = vmatprep.subr.mxu0 0.0
    %1000 = vmatpush1.xpose.msra.mxu0 0.0
    %1001 = vmatprep.subr.mxu0 0.0
    %1002 = vmatpush1.xpose.msra.mxu0 0.0
    %1003 = vmatprep.subr.mxu0 0.0
    %1004 = vmatpush1.xpose.msra.mxu0 0.0
    %1005 = vmatprep.subr.mxu0 0.0
    %1006 = vmatpush1.xpose.msra.mxu0 0.0
    %1007 = vmatprep.subr.mxu0 0.0
    %1008 = vmatpush1.xpose.msra.mxu0 0.0
    %1009 = vmatprep.subr.mxu0 0.0
    %1010 = vmatpush1.xpose.msra.mxu0 0.0
    %1011 = vmatprep.subr.mxu0 0.0
    %1012 = vmatpush1.xpose.msra.mxu0 0.0
    %1013 = vmatprep.subr.mxu0 0.0
    %1014 = vmatpush1.xpose.msra.mxu0 0.0
    %1015 = vmatprep.subr.mxu0 0.0
    %1016 = vmatpush1.xpose.msra.mxu0 0.0
    %1017 = vmatprep.subr.mxu0 0.0
    %1018 = vmatpush1.xpose.msra.mxu0 0.0
    %1019 = vmatprep.subr.mxu0 0.0
    %v1020 = vand.u32 %v732, 4294901760
    %1021 = vmatpush1.xpose.msra.mxu0 %v1020
    %1022 = vmatprep.subr.mxu0 0.0
    %v1023 = vand.u32 %v729, 4294901760
    %1024 = vmatpush1.xpose.msra.mxu0 %v1023
    %1025 = vmatprep.subr.mxu0 0.0
    %1026 = vmatpush2.xpose.msra.mxu0 0.0
    %1027 = vmatprep.subr.mxu0 0.0
    %1028 = vmatpush2.xpose.msra.mxu0 0.0
    %1029 = vmatprep.subr.mxu0 0.0
    %1030 = vmatpush2.xpose.msra.mxu0 0.0
    %1031 = vmatprep.subr.mxu0 0.0
    %1032 = vmatpush2.xpose.msra.mxu0 0.0
    %1033 = vmatprep.subr.mxu0 0.0
    %1034 = vmatpush2.xpose.msra.mxu0 0.0
    %1035 = vmatprep.subr.mxu0 0.0
    %1036 = vmatpush2.xpose.msra.mxu0 0.0
    %1037 = vmatprep.subr.mxu0 0.0
    %1038 = vmatpush2.xpose.msra.mxu0 0.0
    %1039 = vmatprep.subr.mxu0 0.0
    %1040 = vmatpush2.xpose.msra.mxu0 0.0
    %1041 = vmatprep.subr.mxu0 0.0
    %1042 = vmatpush2.xpose.msra.mxu0 0.0
    %1043 = vmatprep.subr.mxu0 0.0
    %1044 = vmatpush2.xpose.msra.mxu0 0.0
    %1045 = vmatprep.subr.mxu0 0.0
    %1046 = vmatpush2.xpose.msra.mxu0 0.0
    %1047 = vmatprep.subr.mxu0 0.0
    %1048 = vmatpush2.xpose.msra.mxu0 0.0
    %1049 = vmatprep.subr.mxu0 0.0
    %1050 = vmatpush2.xpose.msra.mxu0 0.0
    %1051 = vmatprep.subr.mxu0 0.0
    %1052 = vmatpush2.xpose.msra.mxu0 0.0
    %1053 = vmatprep.subr.mxu0 0.0
    %1054 = vmatpush2.xpose.msra.mxu0 0.0
    %1055 = vmatprep.subr.mxu0 0.0
    %1056 = vmatpush2.xpose.msra.mxu0 0.0
    %1057 = vmatprep.mubr.f32.mxu0 0.0
    %v1058 = vand.u32 %v723, 4294901760
    %v1059 = vsub.f32 %v723, %v1058
    %v1060 = vand.u32 %v1059, 4294901760
    %1061 = vmatmul.mubr.f32.gmra.mxu0 %v1060
    %v1062 = vpop.f32.mrf.mxu0
    %v1063 = vadd.f32 %v981, %v1062
    %v1064 = vpop.f32.mrf.mxu0
    %1065 = vmatprep.mubr.f32.mxu0 0.0
    %v1066 = vand.u32 %v726, 4294901760
    %v1067 = vsub.f32 %v726, %v1066
    %v1068 = vand.u32 %v1067, 4294901760
    %1069 = vmatmul.mubr.f32.gmra.mxu0 %v1068
    %v1070 = vpop.f32.mrf.mxu0
    %v1071 = vadd.f32 %v988, %v1070
    %v1072 = vpop.f32.mrf.mxu0
    %1073 = vdwg.mxu0
    %1074 = vmatprep.subr.mxu0 0.0
    %1075 = vmatpush1.xpose.msra.mxu0 0.0
    %1076 = vmatprep.subr.mxu0 0.0
    %1077 = vmatpush1.xpose.msra.mxu0 0.0
    %1078 = vmatprep.subr.mxu0 0.0
    %1079 = vmatpush1.xpose.msra.mxu0 0.0
    %1080 = vmatprep.subr.mxu0 0.0
    %1081 = vmatpush1.xpose.msra.mxu0 0.0
    %1082 = vmatprep.subr.mxu0 0.0
    %1083 = vmatpush1.xpose.msra.mxu0 0.0
    %1084 = vmatprep.subr.mxu0 0.0
    %1085 = vmatpush1.xpose.msra.mxu0 0.0
    %1086 = vmatprep.subr.mxu0 0.0
    %1087 = vmatpush1.xpose.msra.mxu0 0.0
    %1088 = vmatprep.subr.mxu0 0.0
    %1089 = vmatpush1.xpose.msra.mxu0 0.0
    %1090 = vmatprep.subr.mxu0 0.0
    %1091 = vmatpush1.xpose.msra.mxu0 0.0
    %1092 = vmatprep.subr.mxu0 0.0
    %1093 = vmatpush1.xpose.msra.mxu0 0.0
    %1094 = vmatprep.subr.mxu0 0.0
    %1095 = vmatpush1.xpose.msra.mxu0 0.0
    %1096 = vmatprep.subr.mxu0 0.0
    %1097 = vmatpush1.xpose.msra.mxu0 0.0
    %1098 = vmatprep.subr.mxu0 0.0
    %1099 = vmatpush1.xpose.msra.mxu0 0.0
    %1100 = vmatprep.subr.mxu0 0.0
    %1101 = vmatpush1.xpose.msra.mxu0 0.0
    %1102 = vmatprep.subr.mxu0 0.0
    %v1103 = vand.u32 %v732, 4294901760
    %v1104 = vsub.f32 %v732, %v1103
    %v1105 = vand.u32 %v1104, 4294901760
    %1106 = vmatpush1.xpose.msra.mxu0 %v1105
    %1107 = vmatprep.subr.mxu0 0.0
    %v1108 = vand.u32 %v729, 4294901760
    %v1109 = vsub.f32 %v729, %v1108
    %v1110 = vand.u32 %v1109, 4294901760
    %1111 = vmatpush1.xpose.msra.mxu0 %v1110
    %1112 = vmatprep.subr.mxu0 0.0
    %1113 = vmatpush2.xpose.msra.mxu0 0.0
    %1114 = vmatprep.subr.mxu0 0.0
    %1115 = vmatpush2.xpose.msra.mxu0 0.0
    %1116 = vmatprep.subr.mxu0 0.0
    %1117 = vmatpush2.xpose.msra.mxu0 0.0
    %1118 = vmatprep.subr.mxu0 0.0
    %1119 = vmatpush2.xpose.msra.mxu0 0.0
    %1120 = vmatprep.subr.mxu0 0.0
    %1121 = vmatpush2.xpose.msra.mxu0 0.0
    %1122 = vmatprep.subr.mxu0 0.0
    %1123 = vmatpush2.xpose.msra.mxu0 0.0
    %1124 = vmatprep.subr.mxu0 0.0
    %1125 = vmatpush2.xpose.msra.mxu0 0.0
    %1126 = vmatprep.subr.mxu0 0.0
    %1127 = vmatpush2.xpose.msra.mxu0 0.0
    %1128 = vmatprep.subr.mxu0 0.0
    %1129 = vmatpush2.xpose.msra.mxu0 0.0
    %1130 = vmatprep.subr.mxu0 0.0
    %1131 = vmatpush2.xpose.msra.mxu0 0.0
    %1132 = vmatprep.subr.mxu0 0.0
    %1133 = vmatpush2.xpose.msra.mxu0 0.0
    %1134 = vmatprep.subr.mxu0 0.0
    %1135 = vmatpush2.xpose.msra.mxu0 0.0
    %1136 = vmatprep.subr.mxu0 0.0
    %1137 = vmatpush2.xpose.msra.mxu0 0.0
    %1138 = vmatprep.subr.mxu0 0.0
    %1139 = vmatpush2.xpose.msra.mxu0 0.0
    %1140 = vmatprep.subr.mxu0 0.0
    %1141 = vmatpush2.xpose.msra.mxu0 0.0
    %1142 = vmatprep.subr.mxu0 0.0
    %1143 = vmatpush2.xpose.msra.mxu0 0.0
    %1144 = vmatprep.mubr.f32.mxu0 0.0
    %v1145 = vand.u32 %v723, 4294901760
    %1146 = vmatmul.mubr.f32.gmra.mxu0 %v1145
    %v1147 = vpop.f32.mrf.mxu0
    %v1148 = vadd.f32 %v1063, %v1147
    %v1149 = vpop.f32.mrf.mxu0
    %1150 = vmatprep.mubr.f32.mxu0 0.0
    %v1151 = vand.u32 %v726, 4294901760
    %1152 = vmatmul.mubr.f32.gmra.mxu0 %v1151
    %v1153 = vpop.f32.mrf.mxu0
    %v1154 = vadd.f32 %v1071, %v1153
    %v1155 = vpop.f32.mrf.mxu0
    %1156 = vdwg.mxu0
    %1157 = vmatprep.subr.mxu0 0.0
    %1158 = vmatpush1.xpose.msra.mxu0 0.0
    %1159 = vmatprep.subr.mxu0 0.0
    %1160 = vmatpush1.xpose.msra.mxu0 0.0
    %1161 = vmatprep.subr.mxu0 0.0
    %1162 = vmatpush1.xpose.msra.mxu0 0.0
    %1163 = vmatprep.subr.mxu0 0.0
    %1164 = vmatpush1.xpose.msra.mxu0 0.0
    %1165 = vmatprep.subr.mxu0 0.0
    %1166 = vmatpush1.xpose.msra.mxu0 0.0
    %1167 = vmatprep.subr.mxu0 0.0
    %1168 = vmatpush1.xpose.msra.mxu0 0.0
    %1169 = vmatprep.subr.mxu0 0.0
    %1170 = vmatpush1.xpose.msra.mxu0 0.0
    %1171 = vmatprep.subr.mxu0 0.0
    %1172 = vmatpush1.xpose.msra.mxu0 0.0
    %1173 = vmatprep.subr.mxu0 0.0
    %1174 = vmatpush1.xpose.msra.mxu0 0.0
    %1175 = vmatprep.subr.mxu0 0.0
    %1176 = vmatpush1.xpose.msra.mxu0 0.0
    %1177 = vmatprep.subr.mxu0 0.0
    %1178 = vmatpush1.xpose.msra.mxu0 0.0
    %1179 = vmatprep.subr.mxu0 0.0
    %1180 = vmatpush1.xpose.msra.mxu0 0.0
    %1181 = vmatprep.subr.mxu0 0.0
    %1182 = vmatpush1.xpose.msra.mxu0 0.0
    %1183 = vmatprep.subr.mxu0 0.0
    %1184 = vmatpush1.xpose.msra.mxu0 0.0
    %1185 = vmatprep.subr.mxu0 0.0
    %v1186 = vand.u32 %v732, 4294901760
    %1187 = vmatpush1.xpose.msra.mxu0 %v1186
    %1188 = vmatprep.subr.mxu0 0.0
    %v1189 = vand.u32 %v729, 4294901760
    %1190 = vmatpush1.xpose.msra.mxu0 %v1189
    %1191 = vmatprep.subr.mxu0 0.0
    %1192 = vmatpush2.xpose.msra.mxu0 0.0
    %1193 = vmatprep.subr.mxu0 0.0
    %1194 = vmatpush2.xpose.msra.mxu0 0.0
    %1195 = vmatprep.subr.mxu0 0.0
    %1196 = vmatpush2.xpose.msra.mxu0 0.0
    %1197 = vmatprep.subr.mxu0 0.0
    %1198 = vmatpush2.xpose.msra.mxu0 0.0
    %1199 = vmatprep.subr.mxu0 0.0
    %1200 = vmatpush2.xpose.msra.mxu0 0.0
    %1201 = vmatprep.subr.mxu0 0.0
    %1202 = vmatpush2.xpose.msra.mxu0 0.0
    %1203 = vmatprep.subr.mxu0 0.0
    %1204 = vmatpush2.xpose.msra.mxu0 0.0
    %1205 = vmatprep.subr.mxu0 0.0
    %1206 = vmatpush2.xpose.msra.mxu0 0.0
    %1207 = vmatprep.subr.mxu0 0.0
    %1208 = vmatpush2.xpose.msra.mxu0 0.0
    %1209 = vmatprep.subr.mxu0 0.0
    %1210 = vmatpush2.xpose.msra.mxu0 0.0
    %1211 = vmatprep.subr.mxu0 0.0
    %1212 = vmatpush2.xpose.msra.mxu0 0.0
    %1213 = vmatprep.subr.mxu0 0.0
    %1214 = vmatpush2.xpose.msra.mxu0 0.0
    %1215 = vmatprep.subr.mxu0 0.0
    %1216 = vmatpush2.xpose.msra.mxu0 0.0
    %1217 = vmatprep.subr.mxu0 0.0
    %1218 = vmatpush2.xpose.msra.mxu0 0.0
    %1219 = vmatprep.subr.mxu0 0.0
    %1220 = vmatpush2.xpose.msra.mxu0 0.0
    %1221 = vmatprep.subr.mxu0 0.0
    %1222 = vmatpush2.xpose.msra.mxu0 0.0
    %1223 = vmatprep.mubr.f32.mxu0 0.0
    %v1224 = vand.u32 %v723, 4294901760
    %1225 = vmatmul.mubr.f32.gmra.mxu0 %v1224
    %v1226 = vpop.f32.mrf.mxu0
    %v1227 = vadd.f32 %v1148, %v1226
    %v1228 = vpop.f32.mrf.mxu0
    %1229 = vmatprep.mubr.f32.mxu0 0.0
    %v1230 = vand.u32 %v726, 4294901760
    %1231 = vmatmul.mubr.f32.gmra.mxu0 %v1230
    %v1232 = vpop.f32.mrf.mxu0
    %v1233 = vadd.f32 %v1154, %v1232
    %v1234 = vpop.f32.mrf.mxu0
    %1235 = vdwg.mxu0
    %v1240 = vlaneseq
    %v1241 = vand.u32 %v1240, 127
    %v1242 = vlaneseq
    %v1243 = vshrl.u32 %v1242, 7
    %v1244 = vsub.s32 %v1241, %v1243
    %v1245 = vrot.slane %v198, %v1244
    %v1246 = vadd.s32 %v1241, 4294967288
    %v1247 = vlaneseq
    %v1248 = vshrl.u32 %v1247, 7
    %v1249 = vsub.s32 %v1246, %v1248
    %v1250 = vrot.slane %v201, %v1249
    %vm1251 = vcmask 130112
    %v1252 = vsel %vm1251, %v1250, %v1245
    %v1253 = vlaneseq
    %v1254 = vshrl.u32 %v1253, 7
    %v1255 = vsub.s32 %v1241, %v1254
    %v1256 = vrot.slane %v204, %v1255
    %v1257 = vlaneseq
    %v1258 = vshrl.u32 %v1257, 7
    %v1259 = vsub.s32 %v1246, %v1258
    %v1260 = vrot.slane %v207, %v1259
    %v1261 = vsel %vm1251, %v1260, %v1256
    %vm1262 = vcmask 1042434
    %v1263 = vsel %vm1262, %v1252, %v1252
    %vm1264 = vcmask 1043459
    %v1265 = vsel %vm1264, %v1252, %v1263
    %vm1266 = vcmask 1044484
    %v1267 = vsel %vm1266, %v1252, %v1265
    %vm1268 = vcmask 1045509
    %v1269 = vsel %vm1268, %v1252, %v1267
    %vm1270 = vcmask 1046534
    %v1271 = vsel %vm1270, %v1252, %v1269
    %vm1272 = vcmask 1047559
    %v1273 = vsel %vm1272, %v1252, %v1271
    %v1274 = vsel %vm1262, %v1261, %v1261
    %v1275 = vsel %vm1264, %v1261, %v1274
    %v1276 = vsel %vm1266, %v1261, %v1275
    %v1277 = vsel %vm1268, %v1261, %v1276
    %v1278 = vsel %vm1270, %v1261, %v1277
    %v1279 = vsel %vm1272, %v1261, %v1278
    %v1284 = vadd.f32 %v182, %v1273
    %v1285 = vadd.f32 %v185, %v1252
    %v1286 = vadd.f32 %v188, %v1279
    %v1287 = vadd.f32 %v191, %v1261
    %v1288 = vmul.f32 %v713, 2.0
    %v1289 = vmul.f32 %v719, 2.0
    %v1290 = vmul.f32 %v1227, 2.0
    %v1291 = vmul.f32 %v1233, 2.0
    %v1292 = vsub.f32 %v1284, %v1288
    %v1293 = vsub.f32 %v1285, %v1289
    %v1294 = vsub.f32 %v1286, %v1290
    %v1295 = vsub.f32 %v1287, %v1291
    %v1296 = vmax.f32 %v1292, 0.0
    %v1297 = vmax.f32 %v1293, 0.0
    %v1298 = vmax.f32 %v1294, 0.0
    %v1299 = vmax.f32 %v1295, 0.0
    %v1300 = vrsqrt.pop %v1296
    %v1301 = vmul.f32 %v1296, %v1300
    %vm1302 = vcmp.eq.f32.partialorder %v1296, inf
    %v1303 = vsel %vm1302, %v1296, %v1301
    %vm1304 = vcmp.eq.f32.partialorder %v1296, 0.0
    %v1305 = vand.u32 %v1296, 2147483648
    %v1306 = vsel %vm1304, %v1305, %v1303
    %v1307 = vrsqrt.pop %v1297
    %v1308 = vmul.f32 %v1297, %v1307
    %vm1309 = vcmp.eq.f32.partialorder %v1297, inf
    %v1310 = vsel %vm1309, %v1297, %v1308
    %vm1311 = vcmp.eq.f32.partialorder %v1297, 0.0
    %v1312 = vand.u32 %v1297, 2147483648
    %v1313 = vsel %vm1311, %v1312, %v1310
    %v1314 = vrsqrt.pop %v1298
    %v1315 = vmul.f32 %v1298, %v1314
    %vm1316 = vcmp.eq.f32.partialorder %v1298, inf
    %v1317 = vsel %vm1316, %v1298, %v1315
    %vm1318 = vcmp.eq.f32.partialorder %v1298, 0.0
    %v1319 = vand.u32 %v1298, 2147483648
    %v1320 = vsel %vm1318, %v1319, %v1317
    %v1321 = vrsqrt.pop %v1299
    %v1322 = vmul.f32 %v1299, %v1321
    %vm1323 = vcmp.eq.f32.partialorder %v1299, inf
    %v1324 = vsel %vm1323, %v1299, %v1322
    %vm1325 = vcmp.eq.f32.partialorder %v1299, 0.0
    %v1326 = vand.u32 %v1299, 2147483648
    %v1327 = vsel %vm1325, %v1326, %v1324
    %v1328 = vadd.f32 %v1306, 1.0
    %v1329 = vadd.f32 %v1313, 1.0
    %v1330 = vadd.f32 %v1320, 1.0
    %v1331 = vadd.f32 %v1327, 1.0
    %v1332 = vrcp.pop %v1328
    %v1333 = vmul.f32 1.0, %v1332
    %v1334 = vrcp.pop %v1329
    %v1335 = vmul.f32 1.0, %v1334
    %v1336 = vrcp.pop %v1330
    %v1337 = vmul.f32 1.0, %v1336
    %v1338 = vrcp.pop %v1331
    %v1339 = vmul.f32 1.0, %v1338
    %vm1340 = vcmask 80896
    %v1341 = vsel %vm1340, %v1333, 0.0
    %1342 = vadd.xlane.f32.xlu0 %v1341
    %v1343 = vpop.xlane.xlu0 %1342
    %vm1344 = vcmask 74752
    %v1345 = vsel %vm1344, %v1335, 0.0
    %1346 = vadd.xlane.f32.xlu0 %v1345
    %v1347 = vpop.xlane.xlu0 %1346
    %v1348 = vsel %vm1340, %v1337, 0.0
    %1349 = vadd.xlane.f32.xlu0 %v1348
    %v1350 = vpop.xlane.xlu0 %1349
    %v1351 = vsel %vm1344, %v1339, 0.0
    %1352 = vadd.xlane.f32.xlu0 %v1351
    %v1353 = vpop.xlane.xlu0 %1352
    %v1354 = vadd.f32 %v1341, %v1345
    %v1355 = vrot.slane %v1354, 4
    %v1356 = vadd.f32 %v1354, %v1355
    %v1357 = vrot.slane %v1356, 2
    %v1358 = vadd.f32 %v1356, %v1357
    %v1359 = vrot.slane %v1358, 1
    %v1360 = vadd.f32 %v1358, %v1359
    %v1361 = vadd.f32 %v1348, %v1351
    %v1362 = vrot.slane %v1361, 4
    %v1363 = vadd.f32 %v1361, %v1362
    %v1364 = vrot.slane %v1363, 2
    %v1365 = vadd.f32 %v1363, %v1364
    %v1366 = vrot.slane %v1365, 1
    %v1367 = vadd.f32 %v1365, %v1366
    %1369 = vbcast.lane.b32.xlu0 %v1360, 256
    %v1370 = vpop.permute.xlu0 %1369
    %s1372 = sor.u32 256, 8
    %1373 = vbcast.lane.b32.xlu0 %v1360, %s1372
    %v1374 = vpop.permute.xlu0 %1373
    %1376 = vbcast.lane.b32.xlu0 %v1367, 256
    %v1377 = vpop.permute.xlu0 %1376
    %s1379 = sor.u32 256, 8
    %1380 = vbcast.lane.b32.xlu0 %v1367, %s1379
    %v1381 = vpop.permute.xlu0 %1380
    %v1382 = vmul.f32 %v168, %v1343
    %v1383 = vmul.f32 %v169, %v1347
    %v1384 = vmul.f32 %v170, %v1350
    %v1385 = vmul.f32 %v171, %v1353
    %v1386 = vmul.f32 %v172, %v1370
    %v1387 = vmul.f32 %v173, %v1374
    %v1388 = vmul.f32 %v174, %v1377
    %v1389 = vmul.f32 %v175, %v1381
    %vm1394 = vcmask 1046528
    %v1395 = vrot.slane %v1382, 1
    %v1396 = vrot.slane %v1383, 1
    %v1397 = vsel %vm1394, %v1395, %v1396
    %v1398 = vrot.slane %v1384, 1
    %v1399 = vrot.slane %v1385, 1
    %v1400 = vsel %vm1394, %v1398, %v1399
    %v1403 = vadd.f32 %v1382, %v1397
    %v1404 = vadd.f32 %v1384, %v1400
    %v1409 = vrot.slane %v1386, 1
    %v1410 = vrot.slane %v1387, 1
    %v1411 = vsel %vm1394, %v1409, %v1410
    %v1412 = vrot.slane %v1388, 1
    %v1413 = vrot.slane %v1389, 1
    %v1414 = vsel %vm1394, %v1412, %v1413
    %v1417 = vadd.f32 %v1386, %v1411
    %v1418 = vadd.f32 %v1388, %v1414
    %vm1419 = vcmask 1045504
    %v1420 = vrot.slane %v1382, 2
    %v1421 = vrot.slane %v1383, 2
    %v1422 = vsel %vm1419, %v1420, %v1421
    %v1423 = vrot.slane %v1384, 2
    %v1424 = vrot.slane %v1385, 2
    %v1425 = vsel %vm1419, %v1423, %v1424
    %v1428 = vadd.f32 %v1403, %v1422
    %v1429 = vadd.f32 %v1404, %v1425
    %v1430 = vrot.slane %v1386, 2
    %v1431 = vrot.slane %v1387, 2
    %v1432 = vsel %vm1419, %v1430, %v1431
    %v1433 = vrot.slane %v1388, 2
    %v1434 = vrot.slane %v1389, 2
    %v1435 = vsel %vm1419, %v1433, %v1434
    %v1438 = vadd.f32 %v1417, %v1432
    %v1439 = vadd.f32 %v1418, %v1435
    %v1440 = vmul.f32 %v1428, 0.33333334
    %v1441 = vmul.f32 %v1429, 0.33333334
    %1442 = vst.msk [vmem:[#allocation7] sm:$0xff] %vm82, %v1440
    %1443 = vst.msk [vmem:[#allocation7 + $0x8] sm:$0xff] %vm82, %v1441
    %v1444 = vmul.f32 %v1438, 0.33333334
    %v1445 = vmul.f32 %v1439, 0.33333334
    %1446 = vst.msk [vmem:[#allocation8] sm:$0xff] %vm82, %v1444
    %1447 = vst.msk [vmem:[#allocation8 + $0x8] sm:$0xff] %vm82, %v1445
    // Predicated region
    $region30: #{tpu_custom_call.1} parent=1 // pred_check
      _
    $region31: #{tpu_custom_call.1} parent=1 // pred_check_branch
      %1449 = sbr.rel (0) target = $region33
    $region32: #{tpu_custom_call.1} parent=1 // pred_region
      %s1451 = ssub.s32 256, 256
      %1452 = vsyncadd [#allocation5], %s1451
      %s1453 = sshll.u32 [#allocation7], 4
      %s1454 = int_to_ptr.vmem [resolvable:$true] %s1453
      %1459 = dma.vmem_to_hbm [thread:$0]  %s1454, 256, %s6, [#allocation5], 128, 128, 8
    $region33: #{tpu_custom_call.1} parent=1 // pred_fallthru
      _
    // Predicated region
    $region34: #{tpu_custom_call.1} parent=1 // pred_check
      _
    $region35: #{tpu_custom_call.1} parent=1 // pred_check_branch
      %1461 = sbr.rel (0) target = $region37
    $region36: #{tpu_custom_call.1} parent=1 // pred_region
      %s1463 = ssub.s32 256, 256
      %1464 = vsyncadd [#allocation9], %s1463
      %s1465 = sshll.u32 [#allocation8], 4
      %s1466 = int_to_ptr.vmem [resolvable:$true] %s1465
      %1471 = dma.vmem_to_hbm [thread:$0]  %s1466, 256, %s7, [#allocation9], 128, 128, 8
    $region37: #{tpu_custom_call.1} parent=1 // pred_fallthru
      _
    // Predicated region
    $region38: #{tpu_custom_call.1} parent=1 // pred_check
      _
    $region39: #{tpu_custom_call.1} parent=1 // pred_check_branch
      %1473 = sbr.rel (0) target = $region41
    $region40: #{tpu_custom_call.1} parent=1 // pred_region
      %1474 = dma.done [#allocation5], 256
    $region41: #{tpu_custom_call.1} parent=1 // pred_fallthru
      _
    // Predicated region
    $region42: #{tpu_custom_call.1} parent=1 // pred_check
      _
    $region43: #{tpu_custom_call.1} parent=1 // pred_check_branch
      %1476 = sbr.rel (0) target = $region45
    $region44: #{tpu_custom_call.1} parent=1 // pred_region
      %1477 = dma.done [#allocation9], 256
    $region45: #{tpu_custom_call.1} parent=1 // pred_fallthru
      _
    %1478 = vsyncpa [#allocation5], 1
    %1479 = vsyncpa [#allocation9], 1
    %1480 = vsyncpa [#allocation6], 1

</llo_original>
